<compile_context>
chip_gen: v6e
topology: v6e:2x2x1
jax: 0.10.0
libtpu: 0.0.40
codegen_flags: <defaults>
</compile_context>

<pallas_src>
import math

import jax
import jax.numpy as jnp
from jax.experimental import pallas as pl
from jax.experimental.pallas import tpu as pltpu

EPS = 1e-5


# ------------------------------ in-kernel helpers ------------------------------
def _shift_right_1(z):
    # out[:, l] = z[:, l-1], zero at l=0   (left halo of Conv1d padding=1)
    return jnp.concatenate([jnp.zeros_like(z[:, :1]), z[:, :-1]], axis=1)


def _shift_left_1(z):
    # out[:, l] = z[:, l+1], zero at l=L-1 (right halo)
    return jnp.concatenate([z[:, 1:], jnp.zeros_like(z[:, :1])], axis=1)


def _conv3(x16, w_ref):
    """k=3, pad=1 conv along the lane (L) axis.

    Three accumulating MXU matmuls on the *unshifted* bf16 input (the MXU is nearly
    idle at these contraction depths); the +/-1 tap shifts are applied to the f32
    outputs as 1-column halo shifts.  x16: (C_in, L) bf16, w_ref: (3, C_out, C_in).
    Returns (C_out, L) f32.
    """
    z0 = jnp.dot(w_ref[0], x16, preferred_element_type=jnp.float32)  # tap 0 -> x[l-1]
    z1 = jnp.dot(w_ref[1], x16, preferred_element_type=jnp.float32)  # tap 1 -> x[l]
    z2 = jnp.dot(w_ref[2], x16, preferred_element_type=jnp.float32)  # tap 2 -> x[l+1]
    return _shift_right_1(z0) + z1 + _shift_left_1(z2)


def _bn_affine(h, a_ref):
    # Folded training-mode BatchNorm: per-channel scale/shift broadcast over L (lanes).
    return h * a_ref[:, 0:1] + a_ref[:, 1:2]


# ---------------------------------- kernels ------------------------------------
def _stage1_kernel(x_ref, w1_ref, ws_ref, st_ref):
    # Phase 1: raw conv1 + raw 1x1-shortcut; emit per-sample [sum, sumsq] columns so
    # the wrapper can form the global (over N*L) BN1 / shortcut-BN statistics.
    x16 = x_ref[0]                                                   # (Cin, L) bf16
    c1 = _conv3(x16, w1_ref)                                         # (Cout, L) f32
    sc = jnp.dot(ws_ref[...], x16, preferred_element_type=jnp.float32)
    st_ref[0] = jnp.concatenate(
        [jnp.sum(c1, axis=1, keepdims=True),
         jnp.sum(c1 * c1, axis=1, keepdims=True),
         jnp.sum(sc, axis=1, keepdims=True),
         jnp.sum(sc * sc, axis=1, keepdims=True)], axis=1)           # (Cout, 4)


def _stage2_kernel(x_ref, w1_ref, w2_ref, a1_ref, st_ref):
    # Phase 2: recompute conv1 (cheaper than spilling it to HBM), apply folded BN1 +
    # ReLU, conv2; emit per-sample partial sums for the BN2 statistics.
    x16 = x_ref[0]
    h = jnp.maximum(_bn_affine(_conv3(x16, w1_ref), a1_ref), 0.0)
    h2 = _conv3(h.astype(jnp.bfloat16), w2_ref)
    st_ref[0] = jnp.concatenate(
        [jnp.sum(h2, axis=1, keepdims=True),
         jnp.sum(h2 * h2, axis=1, keepdims=True)], axis=1)           # (Cout, 2)


def _stage3_kernel(x_ref, w1_ref, w2_ref, ws_ref, a1_ref, a2_ref, as_ref, out_ref):
    # Phase 3: full forward with every BN folded to a per-channel scale/shift;
    # lane-dense (1, Cout, L) store, no activation intermediates ever touch HBM.
    x16 = x_ref[0]
    h = jnp.maximum(_bn_affine(_conv3(x16, w1_ref), a1_ref), 0.0)
    h2 = _bn_affine(_conv3(h.astype(jnp.bfloat16), w2_ref), a2_ref)
    sc = jnp.dot(ws_ref[...], x16, preferred_element_type=jnp.float32)
    r = _bn_affine(sc, as_ref)
    out_ref[0] = jnp.maximum(h2 + r, 0.0)


# --------------------------------- wrapper -------------------------------------
def _fold_bn(s, q, gamma, beta, inv_count):
    """Fold batch stats (sum s, sum-of-squares q, each (C,)) + gamma/beta into a
    per-channel (C, 2) [scale, shift] array; one-pass variance clamped at 0."""
    mean = s * inv_count
    var = jnp.maximum(q * inv_count - mean * mean, 0.0)
    scale = gamma * jax.lax.rsqrt(var + EPS)
    shift = beta - mean * scale
    return jnp.stack([scale, shift], axis=1).astype(jnp.float32)


@jax.jit
def residual_block_pallas(x_ncl, p):
    """x_ncl: (N, C_in, L) float32 in PyTorch NCL layout -> (N, C_out, L) float32."""
    N, Cin, L = x_ncl.shape
    Cout = p['w1'].shape[0]
    bf16 = jnp.bfloat16

    x16 = x_ncl.astype(bf16)                                   # (N, Cin, L) bf16 stream
    w1t = jnp.transpose(p['w1'], (2, 0, 1)).astype(bf16)       # (3, Cout, Cin)
    w2t = jnp.transpose(p['w2'], (2, 0, 1)).astype(bf16)       # (3, Cout, Cout)
    ws = p['ws'][:, :, 0].astype(bf16)                         # (Cout, Cin)
    # Conv biases b1/b2/bs are intentionally dropped: they are exactly cancelled by
    # the training-mode BatchNorm mean subtraction that immediately follows.

    x_spec = pl.BlockSpec((1, Cin, L), lambda n: (n, 0, 0))
    w1_spec = pl.BlockSpec((3, Cout, Cin), lambda n: (0, 0, 0))
    w2_spec = pl.BlockSpec((3, Cout, Cout), lambda n: (0, 0, 0))
    ws_spec = pl.BlockSpec((Cout, Cin), lambda n: (0, 0))
    aff_spec = pl.BlockSpec((Cout, 2), lambda n: (0, 0))
    cparams = pltpu.CompilerParams(
        dimension_semantics=("parallel",),          # megacore-shardable on v7x
        vmem_limit_bytes=48 * 1024 * 1024)          # fits v7x's 64 MiB physical VMEM

    # ---- phase 1: per-sample partial stats for BN1 / shortcut-BN -------------
    stats1 = pl.pallas_call(
        _stage1_kernel,
        out_shape=jax.ShapeDtypeStruct((N, Cout, 4), jnp.float32),
        grid=(N,),
        in_specs=[x_spec, w1_spec, ws_spec],
        out_specs=pl.BlockSpec((1, Cout, 4), lambda n: (n, 0, 0)),
        compiler_params=cparams,
    )(x16, w1t, ws)

    inv = 1.0 / float(N * L)
    s1 = jnp.sum(stats1, axis=0)                                # (Cout, 4)
    a1 = _fold_bn(s1[:, 0], s1[:, 1], p['g1'], p['be1'], inv)   # BN1 scale/shift
    a_s = _fold_bn(s1[:, 2], s1[:, 3], p['gs'], p['bes'], inv)  # shortcut-BN

    # ---- phase 2: per-sample partial stats for BN2 ----------------------------
    stats2 = pl.pallas_call(
        _stage2_kernel,
        out_shape=jax.ShapeDtypeStruct((N, Cout, 2), jnp.float32),
        grid=(N,),
        in_specs=[x_spec, w1_spec, w2_spec, aff_spec],
        out_specs=pl.BlockSpec((1, Cout, 2), lambda n: (n, 0, 0)),
        compiler_params=cparams,
    )(x16, w1t, w2t, a1)

    s2 = jnp.sum(stats2, axis=0)                                # (Cout, 2)
    a2 = _fold_bn(s2[:, 0], s2[:, 1], p['g2'], p['be2'], inv)

    # ---- phase 3: apply everything, write the (N, Cout, L) output -------------
    out = pl.pallas_call(
        _stage3_kernel,
        out_shape=jax.ShapeDtypeStruct((N, Cout, L), jnp.float32),
        grid=(N,),
        in_specs=[x_spec, w1_spec, w2_spec, ws_spec, aff_spec, aff_spec, aff_spec],
        out_specs=pl.BlockSpec((1, Cout, L), lambda n: (n, 0, 0)),
        compiler_params=cparams,
    )(x16, w1t, w2t, ws, a1, a2, a_s)

    return out


# ---------------------- pure-JAX references (for checking) ----------------------
def _ref_forward(x, p, quantize_matmul_inputs=False):
    """PyTorch-faithful reference (training-mode BN, with conv biases).  If
    quantize_matmul_inputs, round conv inputs/weights to bf16 (f32 accumulation) to
    mirror the kernel's MXU path."""
    q = ((lambda a: a.astype(jnp.bfloat16).astype(jnp.float32))
         if quantize_matmul_inputs else (lambda a: a))

    def conv1d(a, w, b, pad):
        y = jax.lax.conv_general_dilated(
            q(a), q(w), window_strides=(1,), padding=[(pad, pad)],
            dimension_numbers=('NCH', 'OIH', 'NCH'),
            precision=jax.lax.Precision.HIGHEST)
        return y + b[None, :, None]

    def bn(a, g, b):
        mean = a.mean(axis=(0, 2), keepdims=True)
        var = ((a - mean) ** 2).mean(axis=(0, 2), keepdims=True)
        return (a - mean) * jax.lax.rsqrt(var + EPS) * g[None, :, None] + b[None, :, None]

    res = bn(conv1d(x, p['ws'], p['bs'], 0), p['gs'], p['bes'])
    h = jnp.maximum(bn(conv1d(x, p['w1'], p['b1'], 1), p['g1'], p['be1']), 0.0)
    h = bn(conv1d(h, p['w2'], p['b2'], 1), p['g2'], p['be2'])
    return jnp.maximum(h + res, 0.0)


def init_params(key, cin, cout):
    ks = jax.random.split(key, 6)

    def u(k, shape, fan_in):
        b = 1.0 / math.sqrt(fan_in)
        return jax.random.uniform(k, shape, jnp.float32, -b, b)

    return dict(
        w1=u(ks[0], (cout, cin, 3), cin * 3),   b1=u(ks[1], (cout,), cin * 3),
        g1=jnp.ones((cout,), jnp.float32),      be1=jnp.zeros((cout,), jnp.float32),
        w2=u(ks[2], (cout, cout, 3), cout * 3), b2=u(ks[3], (cout,), cout * 3),
        g2=jnp.ones((cout,), jnp.float32),      be2=jnp.zeros((cout,), jnp.float32),
        ws=u(ks[4], (cout, cin, 1), cin),       bs=u(ks[5], (cout,), cin),
        gs=jnp.ones((cout,), jnp.float32),      bes=jnp.zeros((cout,), jnp.float32),
    )


if __name__ == "__main__":
    key = jax.random.PRNGKey(0)
    kx, kp = jax.random.split(key)
    N, Cin, Cout, L = 2, 4, 8, 16
    x = jax.random.normal(kx, (N, Cin, L), jnp.float32)   # PyTorch NCL input
    params = init_params(kp, Cin, Cout)

    y = jax.block_until_ready(residual_block_pallas(x, params))
    y_ref_bf16 = jax.block_until_ready(_ref_forward(x, params, quantize_matmul_inputs=True))
    y_ref_f32 = jax.block_until_ready(_ref_forward(x, params, quantize_matmul_inputs=False))

    assert y.shape == (N, Cout, L)
    # Tight-ish check vs a reference mirroring the bf16-matmul / f32-accumulate path
    # (catches structural bugs), plus a looser bf16-drift bound vs the f32 reference.
    err_exact = float(jnp.max(jnp.abs(y - y_ref_bf16)))
    err_f32 = float(jnp.max(jnp.abs(y - y_ref_f32)))
    assert err_exact < 5e-2, f"mismatch vs bf16-matmul reference: {err_exact}"
    assert err_f32 < 1e-1, f"bf16 drift vs f32 reference too large: {err_f32}"
    print("KERNEL_OK")
</pallas_src>

<mosaic_0001>
module attributes {stable_mosaic.version = 11 : i64} {
  func.func @_stage1_kernel(%arg0: i32, %arg1: memref<1x4x16xbf16, #tpu.memory_space<vmem>>, %arg2: memref<3x8x4xbf16, #tpu.memory_space<vmem>>, %arg3: memref<8x4xbf16, #tpu.memory_space<vmem>>, %arg4: memref<1x8x4xf32, #tpu.memory_space<vmem>>) attributes {dimension_semantics = [#tpu.dimension_semantics<parallel>], iteration_bounds = array<i64: 2>, scalar_prefetch = 0 : i64, scratch_operands = 0 : i64, tpu.core_type = #tpu.core_type<tc>, window_params = [{transform_indices = @transform_0, window_bounds = array<i64: 1, 4, 16>}, {pipeline_mode = #tpu.pipeline_mode<synchronous>, transform_indices = @transform_1, window_bounds = array<i64: 3, 8, 4>}, {pipeline_mode = #tpu.pipeline_mode<synchronous>, transform_indices = @transform_2, window_bounds = array<i64: 8, 4>}, {transform_indices = @transform_3, window_bounds = array<i64: 1, 8, 4>}]} {
    %c0 = arith.constant 0 : index
    %c0_0 = arith.constant 0 : index
    %c0_1 = arith.constant 0 : index
    %0 = vector.load %arg1[%c0, %c0_0, %c0_1] : memref<1x4x16xbf16, #tpu.memory_space<vmem>>, vector<1x4x16xbf16>
    %1 = vector.shape_cast %0 : vector<1x4x16xbf16> to vector<4x16xbf16>
    %c0_2 = arith.constant 0 : index
    %c0_3 = arith.constant 0 : index
    %c0_4 = arith.constant 0 : index
    %2 = vector.load %arg2[%c0_2, %c0_3, %c0_4] : memref<3x8x4xbf16, #tpu.memory_space<vmem>>, vector<1x8x4xbf16>
    %3 = vector.shape_cast %2 : vector<1x8x4xbf16> to vector<8x4xbf16>
    %cst = arith.constant dense<0.000000e+00> : vector<8x16xf32>
    %4 = tpu.matmul %3, %1, %cst {dimension_numbers = #tpu.dot_dimension_numbers<[1], [0], [0], [1], [0, 0, 1, 1], [], []>} : vector<8x4xbf16>, vector<4x16xbf16>, vector<8x16xf32> -> vector<8x16xf32>
    %c1 = arith.constant 1 : index
    %c0_5 = arith.constant 0 : index
    %c0_6 = arith.constant 0 : index
    %5 = vector.load %arg2[%c1, %c0_5, %c0_6] : memref<3x8x4xbf16, #tpu.memory_space<vmem>>, vector<1x8x4xbf16>
    %6 = vector.shape_cast %5 : vector<1x8x4xbf16> to vector<8x4xbf16>
    %cst_7 = arith.constant dense<0.000000e+00> : vector<8x16xf32>
    %7 = tpu.matmul %6, %1, %cst_7 {dimension_numbers = #tpu.dot_dimension_numbers<[1], [0], [0], [1], [0, 0, 1, 1], [], []>} : vector<8x4xbf16>, vector<4x16xbf16>, vector<8x16xf32> -> vector<8x16xf32>
    %c2 = arith.constant 2 : index
    %c0_8 = arith.constant 0 : index
    %c0_9 = arith.constant 0 : index
    %8 = vector.load %arg2[%c2, %c0_8, %c0_9] : memref<3x8x4xbf16, #tpu.memory_space<vmem>>, vector<1x8x4xbf16>
    %9 = vector.shape_cast %8 : vector<1x8x4xbf16> to vector<8x4xbf16>
    %cst_10 = arith.constant dense<0.000000e+00> : vector<8x16xf32>
    %10 = tpu.matmul %9, %1, %cst_10 {dimension_numbers = #tpu.dot_dimension_numbers<[1], [0], [0], [1], [0, 0, 1, 1], [], []>} : vector<8x4xbf16>, vector<4x16xbf16>, vector<8x16xf32> -> vector<8x16xf32>
    %cst_11 = arith.constant 0.000000e+00 : f32
    %11 = vector.broadcast %cst_11 : f32 to vector<8x1xf32>
    %12 = vector.extract_strided_slice %4 {offsets = [0, 0], sizes = [8, 15], strides = [1, 1]} : vector<8x16xf32> to vector<8x15xf32>
    %13 = tpu.concatenate %11, %12 in 1 : vector<8x1xf32>, vector<8x15xf32> -> vector<8x16xf32>
    %14 = arith.addf %13, %7 : vector<8x16xf32>
    %15 = vector.extract_strided_slice %10 {offsets = [0, 1], sizes = [8, 15], strides = [1, 1]} : vector<8x16xf32> to vector<8x15xf32>
    %cst_12 = arith.constant 0.000000e+00 : f32
    %16 = vector.broadcast %cst_12 : f32 to vector<8x1xf32>
    %17 = tpu.concatenate %15, %16 in 1 : vector<8x15xf32>, vector<8x1xf32> -> vector<8x16xf32>
    %18 = arith.addf %14, %17 : vector<8x16xf32>
    %c0_13 = arith.constant 0 : index
    %c0_14 = arith.constant 0 : index
    %19 = vector.load %arg3[%c0_13, %c0_14] : memref<8x4xbf16, #tpu.memory_space<vmem>>, vector<8x4xbf16>
    %cst_15 = arith.constant dense<0.000000e+00> : vector<8x16xf32>
    %20 = tpu.matmul %19, %1, %cst_15 {dimension_numbers = #tpu.dot_dimension_numbers<[1], [0], [0], [1], [0, 0, 1, 1], [], []>} : vector<8x4xbf16>, vector<4x16xbf16>, vector<8x16xf32> -> vector<8x16xf32>
    %cst_16 = arith.constant dense<0.000000e+00> : vector<8xf32>
    %21 = vector.multi_reduction <add>, %18, %cst_16 [1] : vector<8x16xf32> to vector<8xf32>
    %22 = vector.shape_cast %21 : vector<8xf32> to vector<8x1xf32>
    %23 = arith.mulf %18, %18 : vector<8x16xf32>
    %cst_17 = arith.constant dense<0.000000e+00> : vector<8xf32>
    %24 = vector.multi_reduction <add>, %23, %cst_17 [1] : vector<8x16xf32> to vector<8xf32>
    %25 = vector.shape_cast %24 : vector<8xf32> to vector<8x1xf32>
    %cst_18 = arith.constant dense<0.000000e+00> : vector<8xf32>
    %26 = vector.multi_reduction <add>, %20, %cst_18 [1] : vector<8x16xf32> to vector<8xf32>
    %27 = vector.shape_cast %26 : vector<8xf32> to vector<8x1xf32>
    %28 = arith.mulf %20, %20 : vector<8x16xf32>
    %cst_19 = arith.constant dense<0.000000e+00> : vector<8xf32>
    %29 = vector.multi_reduction <add>, %28, %cst_19 [1] : vector<8x16xf32> to vector<8xf32>
    %30 = vector.shape_cast %29 : vector<8xf32> to vector<8x1xf32>
    %31 = tpu.concatenate %22, %25, %27, %30 in 1 : vector<8x1xf32>, vector<8x1xf32>, vector<8x1xf32>, vector<8x1xf32> -> vector<8x4xf32>
    %c0_20 = arith.constant 0 : index
    %c0_21 = arith.constant 0 : index
    %c0_22 = arith.constant 0 : index
    %32 = vector.load %arg4[%c0_20, %c0_21, %c0_22] : memref<1x8x4xf32, #tpu.memory_space<vmem>>, vector<1x8x4xf32>
    %33 = vector.shape_cast %32 : vector<1x8x4xf32> to vector<8x4xf32>
    %34 = vector.shape_cast %31 : vector<8x4xf32> to vector<1x8x4xf32>
    tpu.vector_store %arg4[%c0_20, %c0_21, %c0_22], %34 {strides = array<i32>} : memref<1x8x4xf32, #tpu.memory_space<vmem>>, vector<1x8x4xf32>,
    return
  }
  func.func @transform_0(%arg0: i32) -> (i32, i32, i32) {
    %c0_i32 = arith.constant 0 : i32
    %c0_i32_0 = arith.constant 0 : i32
    %c0_i32_1 = arith.constant 0 : i32
    return %arg0, %c0_i32, %c0_i32_0 : i32, i32, i32
  }
  func.func @transform_1(%arg0: i32) -> (i32, i32, i32) {
    %c0_i32 = arith.constant 0 : i32
    %c0_i32_0 = arith.constant 0 : i32
    %c0_i32_1 = arith.constant 0 : i32
    %c0_i32_2 = arith.constant 0 : i32
    return %c0_i32, %c0_i32_0, %c0_i32_1 : i32, i32, i32
  }
  func.func @transform_2(%arg0: i32) -> (i32, i32) {
    %c0_i32 = arith.constant 0 : i32
    %c0_i32_0 = arith.constant 0 : i32
    %c0_i32_1 = arith.constant 0 : i32
    return %c0_i32, %c0_i32_0 : i32, i32
  }
  func.func @transform_3(%arg0: i32) -> (i32, i32, i32) {
    %c0_i32 = arith.constant 0 : i32
    %c0_i32_0 = arith.constant 0 : i32
    %c0_i32_1 = arith.constant 0 : i32
    return %arg0, %c0_i32, %c0_i32_0 : i32, i32, i32
  }
}

module attributes {stable_mosaic.version = 11 : i64} {
  func.func @_stage2_kernel(%arg0: i32, %arg1: memref<1x4x16xbf16, #tpu.memory_space<vmem>>, %arg2: memref<3x8x4xbf16, #tpu.memory_space<vmem>>, %arg3: memref<3x8x8xbf16, #tpu.memory_space<vmem>>, %arg4: memref<8x2xf32, #tpu.memory_space<vmem>>, %arg5: memref<1x8x2xf32, #tpu.memory_space<vmem>>) attributes {dimension_semantics = [#tpu.dimension_semantics<parallel>], iteration_bounds = array<i64: 2>, scalar_prefetch = 0 : i64, scratch_operands = 0 : i64, tpu.core_type = #tpu.core_type<tc>, window_params = [{transform_indices = @transform_0, window_bounds = array<i64: 1, 4, 16>}, {pipeline_mode = #tpu.pipeline_mode<synchronous>, transform_indices = @transform_1, window_bounds = array<i64: 3, 8, 4>}, {pipeline_mode = #tpu.pipeline_mode<synchronous>, transform_indices = @transform_2, window_bounds = array<i64: 3, 8, 8>}, {pipeline_mode = #tpu.pipeline_mode<synchronous>, transform_indices = @transform_3, window_bounds = array<i64: 8, 2>}, {transform_indices = @transform_4, window_bounds = array<i64: 1, 8, 2>}]} {
    %c0 = arith.constant 0 : index
    %c0_0 = arith.constant 0 : index
    %c0_1 = arith.constant 0 : index
    %0 = vector.load %arg1[%c0, %c0_0, %c0_1] : memref<1x4x16xbf16, #tpu.memory_space<vmem>>, vector<1x4x16xbf16>
    %1 = vector.shape_cast %0 : vector<1x4x16xbf16> to vector<4x16xbf16>
    %c0_2 = arith.constant 0 : index
    %c0_3 = arith.constant 0 : index
    %c0_4 = arith.constant 0 : index
    %2 = vector.load %arg2[%c0_2, %c0_3, %c0_4] : memref<3x8x4xbf16, #tpu.memory_space<vmem>>, vector<1x8x4xbf16>
    %3 = vector.shape_cast %2 : vector<1x8x4xbf16> to vector<8x4xbf16>
    %cst = arith.constant dense<0.000000e+00> : vector<8x16xf32>
    %4 = tpu.matmul %3, %1, %cst {dimension_numbers = #tpu.dot_dimension_numbers<[1], [0], [0], [1], [0, 0, 1, 1], [], []>} : vector<8x4xbf16>, vector<4x16xbf16>, vector<8x16xf32> -> vector<8x16xf32>
    %c1 = arith.constant 1 : index
    %c0_5 = arith.constant 0 : index
    %c0_6 = arith.constant 0 : index
    %5 = vector.load %arg2[%c1, %c0_5, %c0_6] : memref<3x8x4xbf16, #tpu.memory_space<vmem>>, vector<1x8x4xbf16>
    %6 = vector.shape_cast %5 : vector<1x8x4xbf16> to vector<8x4xbf16>
    %cst_7 = arith.constant dense<0.000000e+00> : vector<8x16xf32>
    %7 = tpu.matmul %6, %1, %cst_7 {dimension_numbers = #tpu.dot_dimension_numbers<[1], [0], [0], [1], [0, 0, 1, 1], [], []>} : vector<8x4xbf16>, vector<4x16xbf16>, vector<8x16xf32> -> vector<8x16xf32>
    %c2 = arith.constant 2 : index
    %c0_8 = arith.constant 0 : index
    %c0_9 = arith.constant 0 : index
    %8 = vector.load %arg2[%c2, %c0_8, %c0_9] : memref<3x8x4xbf16, #tpu.memory_space<vmem>>, vector<1x8x4xbf16>
    %9 = vector.shape_cast %8 : vector<1x8x4xbf16> to vector<8x4xbf16>
    %cst_10 = arith.constant dense<0.000000e+00> : vector<8x16xf32>
    %10 = tpu.matmul %9, %1, %cst_10 {dimension_numbers = #tpu.dot_dimension_numbers<[1], [0], [0], [1], [0, 0, 1, 1], [], []>} : vector<8x4xbf16>, vector<4x16xbf16>, vector<8x16xf32> -> vector<8x16xf32>
    %cst_11 = arith.constant 0.000000e+00 : f32
    %11 = vector.broadcast %cst_11 : f32 to vector<8x1xf32>
    %12 = vector.extract_strided_slice %4 {offsets = [0, 0], sizes = [8, 15], strides = [1, 1]} : vector<8x16xf32> to vector<8x15xf32>
    %13 = tpu.concatenate %11, %12 in 1 : vector<8x1xf32>, vector<8x15xf32> -> vector<8x16xf32>
    %14 = arith.addf %13, %7 : vector<8x16xf32>
    %15 = vector.extract_strided_slice %10 {offsets = [0, 1], sizes = [8, 15], strides = [1, 1]} : vector<8x16xf32> to vector<8x15xf32>
    %cst_12 = arith.constant 0.000000e+00 : f32
    %16 = vector.broadcast %cst_12 : f32 to vector<8x1xf32>
    %17 = tpu.concatenate %15, %16 in 1 : vector<8x15xf32>, vector<8x1xf32> -> vector<8x16xf32>
    %18 = arith.addf %14, %17 : vector<8x16xf32>
    %c0_13 = arith.constant 0 : index
    %c0_14 = arith.constant 0 : index
    %19 = vector.load %arg4[%c0_13, %c0_14] : memref<8x2xf32, #tpu.memory_space<vmem>>, vector<8x1xf32>
    %20 = vector.broadcast %19 : vector<8x1xf32> to vector<8x16xf32>
    %21 = arith.mulf %18, %20 : vector<8x16xf32>
    %c0_15 = arith.constant 0 : index
    %c1_16 = arith.constant 1 : index
    %22 = vector.load %arg4[%c0_15, %c1_16] : memref<8x2xf32, #tpu.memory_space<vmem>>, vector<8x1xf32>
    %23 = vector.broadcast %22 : vector<8x1xf32> to vector<8x16xf32>
    %24 = arith.addf %21, %23 : vector<8x16xf32>
    %cst_17 = arith.constant 0.000000e+00 : f32
    %25 = vector.broadcast %cst_17 : f32 to vector<8x16xf32>
    %26 = arith.maximumf %24, %25 : vector<8x16xf32>
    %27 = arith.truncf %26 : vector<8x16xf32> to vector<8x16xbf16>
    %c0_18 = arith.constant 0 : index
    %c0_19 = arith.constant 0 : index
    %c0_20 = arith.constant 0 : index
    %28 = vector.load %arg3[%c0_18, %c0_19, %c0_20] : memref<3x8x8xbf16, #tpu.memory_space<vmem>>, vector<1x8x8xbf16>
    %29 = vector.shape_cast %28 : vector<1x8x8xbf16> to vector<8x8xbf16>
    %cst_21 = arith.constant dense<0.000000e+00> : vector<8x16xf32>
    %30 = tpu.matmul %29, %27, %cst_21 {dimension_numbers = #tpu.dot_dimension_numbers<[1], [0], [0], [1], [0, 0, 1, 1], [], []>} : vector<8x8xbf16>, vector<8x16xbf16>, vector<8x16xf32> -> vector<8x16xf32>
    %c1_22 = arith.constant 1 : index
    %c0_23 = arith.constant 0 : index
    %c0_24 = arith.constant 0 : index
    %31 = vector.load %arg3[%c1_22, %c0_23, %c0_24] : memref<3x8x8xbf16, #tpu.memory_space<vmem>>, vector<1x8x8xbf16>
    %32 = vector.shape_cast %31 : vector<1x8x8xbf16> to vector<8x8xbf16>
    %cst_25 = arith.constant dense<0.000000e+00> : vector<8x16xf32>
    %33 = tpu.matmul %32, %27, %cst_25 {dimension_numbers = #tpu.dot_dimension_numbers<[1], [0], [0], [1], [0, 0, 1, 1], [], []>} : vector<8x8xbf16>, vector<8x16xbf16>, vector<8x16xf32> -> vector<8x16xf32>
    %c2_26 = arith.constant 2 : index
    %c0_27 = arith.constant 0 : index
    %c0_28 = arith.constant 0 : index
    %34 = vector.load %arg3[%c2_26, %c0_27, %c0_28] : memref<3x8x8xbf16, #tpu.memory_space<vmem>>, vector<1x8x8xbf16>
    %35 = vector.shape_cast %34 : vector<1x8x8xbf16> to vector<8x8xbf16>
    %cst_29 = arith.constant dense<0.000000e+00> : vector<8x16xf32>
    %36 = tpu.matmul %35, %27, %cst_29 {dimension_numbers = #tpu.dot_dimension_numbers<[1], [0], [0], [1], [0, 0, 1, 1], [], []>} : vector<8x8xbf16>, vector<8x16xbf16>, vector<8x16xf32> -> vector<8x16xf32>
    %cst_30 = arith.constant 0.000000e+00 : f32
    %37 = vector.broadcast %cst_30 : f32 to vector<8x1xf32>
    %38 = vector.extract_strided_slice %30 {offsets = [0, 0], sizes = [8, 15], strides = [1, 1]} : vector<8x16xf32> to vector<8x15xf32>
    %39 = tpu.concatenate %37, %38 in 1 : vector<8x1xf32>, vector<8x15xf32> -> vector<8x16xf32>
    %40 = arith.addf %39, %33 : vector<8x16xf32>
    %41 = vector.extract_strided_slice %36 {offsets = [0, 1], sizes = [8, 15], strides = [1, 1]} : vector<8x16xf32> to vector<8x15xf32>
    %cst_31 = arith.constant 0.000000e+00 : f32
    %42 = vector.broadcast %cst_31 : f32 to vector<8x1xf32>
    %43 = tpu.concatenate %41, %42 in 1 : vector<8x15xf32>, vector<8x1xf32> -> vector<8x16xf32>
    %44 = arith.addf %40, %43 : vector<8x16xf32>
    %cst_32 = arith.constant dense<0.000000e+00> : vector<8xf32>
    %45 = vector.multi_reduction <add>, %44, %cst_32 [1] : vector<8x16xf32> to vector<8xf32>
    %46 = vector.shape_cast %45 : vector<8xf32> to vector<8x1xf32>
    %47 = arith.mulf %44, %44 : vector<8x16xf32>
    %cst_33 = arith.constant dense<0.000000e+00> : vector<8xf32>
    %48 = vector.multi_reduction <add>, %47, %cst_33 [1] : vector<8x16xf32> to vector<8xf32>
    %49 = vector.shape_cast %48 : vector<8xf32> to vector<8x1xf32>
    %50 = tpu.concatenate %46, %49 in 1 : vector<8x1xf32>, vector<8x1xf32> -> vector<8x2xf32>
    %c0_34 = arith.constant 0 : index
    %c0_35 = arith.constant 0 : index
    %c0_36 = arith.constant 0 : index
    %51 = vector.load %arg5[%c0_34, %c0_35, %c0_36] : memref<1x8x2xf32, #tpu.memory_space<vmem>>, vector<1x8x2xf32>
    %52 = vector.shape_cast %51 : vector<1x8x2xf32> to vector<8x2xf32>
    %53 = vector.shape_cast %50 : vector<8x2xf32> to vector<1x8x2xf32>
    tpu.vector_store %arg5[%c0_34, %c0_35, %c0_36], %53 {strides = array<i32>} : memref<1x8x2xf32, #tpu.memory_space<vmem>>, vector<1x8x2xf32>,
    return
  }
  func.func @transform_0(%arg0: i32) -> (i32, i32, i32) {
    %c0_i32 = arith.constant 0 : i32
    %c0_i32_0 = arith.constant 0 : i32
    %c0_i32_1 = arith.constant 0 : i32
    return %arg0, %c0_i32, %c0_i32_0 : i32, i32, i32
  }
  func.func @transform_1(%arg0: i32) -> (i32, i32, i32) {
    %c0_i32 = arith.constant 0 : i32
    %c0_i32_0 = arith.constant 0 : i32
    %c0_i32_1 = arith.constant 0 : i32
    %c0_i32_2 = arith.constant 0 : i32
    return %c0_i32, %c0_i32_0, %c0_i32_1 : i32, i32, i32
  }
  func.func @transform_2(%arg0: i32) -> (i32, i32, i32) {
    %c0_i32 = arith.constant 0 : i32
    %c0_i32_0 = arith.constant 0 : i32
    %c0_i32_1 = arith.constant 0 : i32
    %c0_i32_2 = arith.constant 0 : i32
    return %c0_i32, %c0_i32_0, %c0_i32_1 : i32, i32, i32
  }
  func.func @transform_3(%arg0: i32) -> (i32, i32) {
    %c0_i32 = arith.constant 0 : i32
    %c0_i32_0 = arith.constant 0 : i32
    %c0_i32_1 = arith.constant 0 : i32
    return %c0_i32, %c0_i32_0 : i32, i32
  }
  func.func @transform_4(%arg0: i32) -> (i32, i32, i32) {
    %c0_i32 = arith.constant 0 : i32
    %c0_i32_0 = arith.constant 0 : i32
    %c0_i32_1 = arith.constant 0 : i32
    return %arg0, %c0_i32, %c0_i32_0 : i32, i32, i32
  }
}

module attributes {stable_mosaic.version = 11 : i64} {
  func.func @_stage3_kernel(%arg0: i32, %arg1: memref<1x4x16xbf16, #tpu.memory_space<vmem>>, %arg2: memref<3x8x4xbf16, #tpu.memory_space<vmem>>, %arg3: memref<3x8x8xbf16, #tpu.memory_space<vmem>>, %arg4: memref<8x4xbf16, #tpu.memory_space<vmem>>, %arg5: memref<8x2xf32, #tpu.memory_space<vmem>>, %arg6: memref<8x2xf32, #tpu.memory_space<vmem>>, %arg7: memref<8x2xf32, #tpu.memory_space<vmem>>, %arg8: memref<1x8x16xf32, #tpu.memory_space<vmem>>) attributes {dimension_semantics = [#tpu.dimension_semantics<parallel>], iteration_bounds = array<i64: 2>, scalar_prefetch = 0 : i64, scratch_operands = 0 : i64, tpu.core_type = #tpu.core_type<tc>, window_params = [{transform_indices = @transform_0, window_bounds = array<i64: 1, 4, 16>}, {pipeline_mode = #tpu.pipeline_mode<synchronous>, transform_indices = @transform_1, window_bounds = array<i64: 3, 8, 4>}, {pipeline_mode = #tpu.pipeline_mode<synchronous>, transform_indices = @transform_2, window_bounds = array<i64: 3, 8, 8>}, {pipeline_mode = #tpu.pipeline_mode<synchronous>, transform_indices = @transform_3, window_bounds = array<i64: 8, 4>}, {pipeline_mode = #tpu.pipeline_mode<synchronous>, transform_indices = @transform_4, window_bounds = array<i64: 8, 2>}, {pipeline_mode = #tpu.pipeline_mode<synchronous>, transform_indices = @transform_5, window_bounds = array<i64: 8, 2>}, {pipeline_mode = #tpu.pipeline_mode<synchronous>, transform_indices = @transform_6, window_bounds = array<i64: 8, 2>}, {transform_indices = @transform_7, window_bounds = array<i64: 1, 8, 16>}]} {
    %c0 = arith.constant 0 : index
    %c0_0 = arith.constant 0 : index
    %c0_1 = arith.constant 0 : index
    %0 = vector.load %arg1[%c0, %c0_0, %c0_1] : memref<1x4x16xbf16, #tpu.memory_space<vmem>>, vector<1x4x16xbf16>
    %1 = vector.shape_cast %0 : vector<1x4x16xbf16> to vector<4x16xbf16>
    %c0_2 = arith.constant 0 : index
    %c0_3 = arith.constant 0 : index
    %c0_4 = arith.constant 0 : index
    %2 = vector.load %arg2[%c0_2, %c0_3, %c0_4] : memref<3x8x4xbf16, #tpu.memory_space<vmem>>, vector<1x8x4xbf16>
    %3 = vector.shape_cast %2 : vector<1x8x4xbf16> to vector<8x4xbf16>
    %cst = arith.constant dense<0.000000e+00> : vector<8x16xf32>
    %4 = tpu.matmul %3, %1, %cst {dimension_numbers = #tpu.dot_dimension_numbers<[1], [0], [0], [1], [0, 0, 1, 1], [], []>} : vector<8x4xbf16>, vector<4x16xbf16>, vector<8x16xf32> -> vector<8x16xf32>
    %c1 = arith.constant 1 : index
    %c0_5 = arith.constant 0 : index
    %c0_6 = arith.constant 0 : index
    %5 = vector.load %arg2[%c1, %c0_5, %c0_6] : memref<3x8x4xbf16, #tpu.memory_space<vmem>>, vector<1x8x4xbf16>
    %6 = vector.shape_cast %5 : vector<1x8x4xbf16> to vector<8x4xbf16>
    %cst_7 = arith.constant dense<0.000000e+00> : vector<8x16xf32>
    %7 = tpu.matmul %6, %1, %cst_7 {dimension_numbers = #tpu.dot_dimension_numbers<[1], [0], [0], [1], [0, 0, 1, 1], [], []>} : vector<8x4xbf16>, vector<4x16xbf16>, vector<8x16xf32> -> vector<8x16xf32>
    %c2 = arith.constant 2 : index
    %c0_8 = arith.constant 0 : index
    %c0_9 = arith.constant 0 : index
    %8 = vector.load %arg2[%c2, %c0_8, %c0_9] : memref<3x8x4xbf16, #tpu.memory_space<vmem>>, vector<1x8x4xbf16>
    %9 = vector.shape_cast %8 : vector<1x8x4xbf16> to vector<8x4xbf16>
    %cst_10 = arith.constant dense<0.000000e+00> : vector<8x16xf32>
    %10 = tpu.matmul %9, %1, %cst_10 {dimension_numbers = #tpu.dot_dimension_numbers<[1], [0], [0], [1], [0, 0, 1, 1], [], []>} : vector<8x4xbf16>, vector<4x16xbf16>, vector<8x16xf32> -> vector<8x16xf32>
    %cst_11 = arith.constant 0.000000e+00 : f32
    %11 = vector.broadcast %cst_11 : f32 to vector<8x1xf32>
    %12 = vector.extract_strided_slice %4 {offsets = [0, 0], sizes = [8, 15], strides = [1, 1]} : vector<8x16xf32> to vector<8x15xf32>
    %13 = tpu.concatenate %11, %12 in 1 : vector<8x1xf32>, vector<8x15xf32> -> vector<8x16xf32>
    %14 = arith.addf %13, %7 : vector<8x16xf32>
    %15 = vector.extract_strided_slice %10 {offsets = [0, 1], sizes = [8, 15], strides = [1, 1]} : vector<8x16xf32> to vector<8x15xf32>
    %cst_12 = arith.constant 0.000000e+00 : f32
    %16 = vector.broadcast %cst_12 : f32 to vector<8x1xf32>
    %17 = tpu.concatenate %15, %16 in 1 : vector<8x15xf32>, vector<8x1xf32> -> vector<8x16xf32>
    %18 = arith.addf %14, %17 : vector<8x16xf32>
    %c0_13 = arith.constant 0 : index
    %c0_14 = arith.constant 0 : index
    %19 = vector.load %arg5[%c0_13, %c0_14] : memref<8x2xf32, #tpu.memory_space<vmem>>, vector<8x1xf32>
    %20 = vector.broadcast %19 : vector<8x1xf32> to vector<8x16xf32>
    %21 = arith.mulf %18, %20 : vector<8x16xf32>
    %c0_15 = arith.constant 0 : index
    %c1_16 = arith.constant 1 : index
    %22 = vector.load %arg5[%c0_15, %c1_16] : memref<8x2xf32, #tpu.memory_space<vmem>>, vector<8x1xf32>
    %23 = vector.broadcast %22 : vector<8x1xf32> to vector<8x16xf32>
    %24 = arith.addf %21, %23 : vector<8x16xf32>
    %cst_17 = arith.constant 0.000000e+00 : f32
    %25 = vector.broadcast %cst_17 : f32 to vector<8x16xf32>
    %26 = arith.maximumf %24, %25 : vector<8x16xf32>
    %27 = arith.truncf %26 : vector<8x16xf32> to vector<8x16xbf16>
    %c0_18 = arith.constant 0 : index
    %c0_19 = arith.constant 0 : index
    %c0_20 = arith.constant 0 : index
    %28 = vector.load %arg3[%c0_18, %c0_19, %c0_20] : memref<3x8x8xbf16, #tpu.memory_space<vmem>>, vector<1x8x8xbf16>
    %29 = vector.shape_cast %28 : vector<1x8x8xbf16> to vector<8x8xbf16>
    %cst_21 = arith.constant dense<0.000000e+00> : vector<8x16xf32>
    %30 = tpu.matmul %29, %27, %cst_21 {dimension_numbers = #tpu.dot_dimension_numbers<[1], [0], [0], [1], [0, 0, 1, 1], [], []>} : vector<8x8xbf16>, vector<8x16xbf16>, vector<8x16xf32> -> vector<8x16xf32>
    %c1_22 = arith.constant 1 : index
    %c0_23 = arith.constant 0 : index
    %c0_24 = arith.constant 0 : index
    %31 = vector.load %arg3[%c1_22, %c0_23, %c0_24] : memref<3x8x8xbf16, #tpu.memory_space<vmem>>, vector<1x8x8xbf16>
    %32 = vector.shape_cast %31 : vector<1x8x8xbf16> to vector<8x8xbf16>
    %cst_25 = arith.constant dense<0.000000e+00> : vector<8x16xf32>
    %33 = tpu.matmul %32, %27, %cst_25 {dimension_numbers = #tpu.dot_dimension_numbers<[1], [0], [0], [1], [0, 0, 1, 1], [], []>} : vector<8x8xbf16>, vector<8x16xbf16>, vector<8x16xf32> -> vector<8x16xf32>
    %c2_26 = arith.constant 2 : index
    %c0_27 = arith.constant 0 : index
    %c0_28 = arith.constant 0 : index
    %34 = vector.load %arg3[%c2_26, %c0_27, %c0_28] : memref<3x8x8xbf16, #tpu.memory_space<vmem>>, vector<1x8x8xbf16>
    %35 = vector.shape_cast %34 : vector<1x8x8xbf16> to vector<8x8xbf16>
    %cst_29 = arith.constant dense<0.000000e+00> : vector<8x16xf32>
    %36 = tpu.matmul %35, %27, %cst_29 {dimension_numbers = #tpu.dot_dimension_numbers<[1], [0], [0], [1], [0, 0, 1, 1], [], []>} : vector<8x8xbf16>, vector<8x16xbf16>, vector<8x16xf32> -> vector<8x16xf32>
    %cst_30 = arith.constant 0.000000e+00 : f32
    %37 = vector.broadcast %cst_30 : f32 to vector<8x1xf32>
    %38 = vector.extract_strided_slice %30 {offsets = [0, 0], sizes = [8, 15], strides = [1, 1]} : vector<8x16xf32> to vector<8x15xf32>
    %39 = tpu.concatenate %37, %38 in 1 : vector<8x1xf32>, vector<8x15xf32> -> vector<8x16xf32>
    %40 = arith.addf %39, %33 : vector<8x16xf32>
    %41 = vector.extract_strided_slice %36 {offsets = [0, 1], sizes = [8, 15], strides = [1, 1]} : vector<8x16xf32> to vector<8x15xf32>
    %cst_31 = arith.constant 0.000000e+00 : f32
    %42 = vector.broadcast %cst_31 : f32 to vector<8x1xf32>
    %43 = tpu.concatenate %41, %42 in 1 : vector<8x15xf32>, vector<8x1xf32> -> vector<8x16xf32>
    %44 = arith.addf %40, %43 : vector<8x16xf32>
    %c0_32 = arith.constant 0 : index
    %c0_33 = arith.constant 0 : index
    %45 = vector.load %arg6[%c0_32, %c0_33] : memref<8x2xf32, #tpu.memory_space<vmem>>, vector<8x1xf32>
    %46 = vector.broadcast %45 : vector<8x1xf32> to vector<8x16xf32>
    %47 = arith.mulf %44, %46 : vector<8x16xf32>
    %c0_34 = arith.constant 0 : index
    %c1_35 = arith.constant 1 : index
    %48 = vector.load %arg6[%c0_34, %c1_35] : memref<8x2xf32, #tpu.memory_space<vmem>>, vector<8x1xf32>
    %49 = vector.broadcast %48 : vector<8x1xf32> to vector<8x16xf32>
    %50 = arith.addf %47, %49 : vector<8x16xf32>
    %c0_36 = arith.constant 0 : index
    %c0_37 = arith.constant 0 : index
    %51 = vector.load %arg4[%c0_36, %c0_37] : memref<8x4xbf16, #tpu.memory_space<vmem>>, vector<8x4xbf16>
    %cst_38 = arith.constant dense<0.000000e+00> : vector<8x16xf32>
    %52 = tpu.matmul %51, %1, %cst_38 {dimension_numbers = #tpu.dot_dimension_numbers<[1], [0], [0], [1], [0, 0, 1, 1], [], []>} : vector<8x4xbf16>, vector<4x16xbf16>, vector<8x16xf32> -> vector<8x16xf32>
    %c0_39 = arith.constant 0 : index
    %c0_40 = arith.constant 0 : index
    %53 = vector.load %arg7[%c0_39, %c0_40] : memref<8x2xf32, #tpu.memory_space<vmem>>, vector<8x1xf32>
    %54 = vector.broadcast %53 : vector<8x1xf32> to vector<8x16xf32>
    %55 = arith.mulf %52, %54 : vector<8x16xf32>
    %c0_41 = arith.constant 0 : index
    %c1_42 = arith.constant 1 : index
    %56 = vector.load %arg7[%c0_41, %c1_42] : memref<8x2xf32, #tpu.memory_space<vmem>>, vector<8x1xf32>
    %57 = vector.broadcast %56 : vector<8x1xf32> to vector<8x16xf32>
    %58 = arith.addf %55, %57 : vector<8x16xf32>
    %59 = arith.addf %50, %58 : vector<8x16xf32>
    %cst_43 = arith.constant 0.000000e+00 : f32
    %60 = vector.broadcast %cst_43 : f32 to vector<8x16xf32>
    %61 = arith.maximumf %59, %60 : vector<8x16xf32>
    %c0_44 = arith.constant 0 : index
    %c0_45 = arith.constant 0 : index
    %c0_46 = arith.constant 0 : index
    %62 = vector.load %arg8[%c0_44, %c0_45, %c0_46] : memref<1x8x16xf32, #tpu.memory_space<vmem>>, vector<1x8x16xf32>
    %63 = vector.shape_cast %62 : vector<1x8x16xf32> to vector<8x16xf32>
    %64 = vector.shape_cast %61 : vector<8x16xf32> to vector<1x8x16xf32>
    tpu.vector_store %arg8[%c0_44, %c0_45, %c0_46], %64 {strides = array<i32>} : memref<1x8x16xf32, #tpu.memory_space<vmem>>, vector<1x8x16xf32>,
    return
  }
  func.func @transform_0(%arg0: i32) -> (i32, i32, i32) {
    %c0_i32 = arith.constant 0 : i32
    %c0_i32_0 = arith.constant 0 : i32
    %c0_i32_1 = arith.constant 0 : i32
    return %arg0, %c0_i32, %c0_i32_0 : i32, i32, i32
  }
  func.func @transform_1(%arg0: i32) -> (i32, i32, i32) {
    %c0_i32 = arith.constant 0 : i32
    %c0_i32_0 = arith.constant 0 : i32
    %c0_i32_1 = arith.constant 0 : i32
    %c0_i32_2 = arith.constant 0 : i32
    return %c0_i32, %c0_i32_0, %c0_i32_1 : i32, i32, i32
  }
  func.func @transform_2(%arg0: i32) -> (i32, i32, i32) {
    %c0_i32 = arith.constant 0 : i32
    %c0_i32_0 = arith.constant 0 : i32
    %c0_i32_1 = arith.constant 0 : i32
    %c0_i32_2 = arith.constant 0 : i32
    return %c0_i32, %c0_i32_0, %c0_i32_1 : i32, i32, i32
  }
  func.func @transform_3(%arg0: i32) -> (i32, i32) {
    %c0_i32 = arith.constant 0 : i32
    %c0_i32_0 = arith.constant 0 : i32
    %c0_i32_1 = arith.constant 0 : i32
    return %c0_i32, %c0_i32_0 : i32, i32
  }
  func.func @transform_4(%arg0: i32) -> (i32, i32) {
    %c0_i32 = arith.constant 0 : i32
    %c0_i32_0 = arith.constant 0 : i32
    %c0_i32_1 = arith.constant 0 : i32
    return %c0_i32, %c0_i32_0 : i32, i32
  }
  func.func @transform_5(%arg0: i32) -> (i32, i32) {
    %c0_i32 = arith.constant 0 : i32
    %c0_i32_0 = arith.constant 0 : i32
    %c0_i32_1 = arith.constant 0 : i32
    return %c0_i32, %c0_i32_0 : i32, i32
  }
  func.func @transform_6(%arg0: i32) -> (i32, i32) {
    %c0_i32 = arith.constant 0 : i32
    %c0_i32_0 = arith.constant 0 : i32
    %c0_i32_1 = arith.constant 0 : i32
    return %c0_i32, %c0_i32_0 : i32, i32
  }
  func.func @transform_7(%arg0: i32) -> (i32, i32, i32) {
    %c0_i32 = arith.constant 0 : i32
    %c0_i32_0 = arith.constant 0 : i32
    %c0_i32_1 = arith.constant 0 : i32
    return %arg0, %c0_i32, %c0_i32_0 : i32, i32, i32
  }
}

</mosaic_0001>

<llo_original>
// kernel: residual_block_pallas.3
$region0: #{residual_block_pallas.3}
  #allocation0 [shape = 'u32[]', space=smem, size = 0x4, offset = 0x4, fixed_abs, tag = 'smem constant byte address 0x4 - core index']
  #allocation1 [shape = 'u32[144,128]{1,0:T(1,128)}', space=vmem, size = 0x12000, scoped, tag = 'internal scratch']
  %s0 = inlined_call_operand.vmem [shape: bf16[2,4,16], index: 0, kind: input, shape index: {}]
  %s1 = inlined_call_operand.vmem [shape: bf16[3,8,4], index: 1, kind: input, shape index: {}]
  %s2 = inlined_call_operand.vmem [shape: bf16[8,4], index: 2, kind: input, shape index: {}]
  %s3 = inlined_call_operand.vmem [shape: f32[2,8,4], index: 3, kind: output, shape index: {}]
  %s4 = sld [smem:[#allocation0]]
  $region45: #{residual_block_pallas.3} parent=0
    _
  %s6 = ssub.s32 1, %s4
  %s7 = scalar_select 0, %s6, %s4
  loop: start=0, step=1, limit=4
  $region2: #{residual_block_pallas.3} parent=0 // loop_pre_header
    _
  $region3: #{residual_block_pallas.3} parent=0 // loop_header
    %s9 = sphi 0, %s13
    %p10 = scmp.ge.s32.totalorder %s9, 4
    %s19 = sphi 0, %s21
    %s22 = sphi 0, %s19
    %s23 = sphi 0, %s22
    %s39 = sphi 0, %s23
    %s43 = sphi 0, %s43
    %s45 = sphi 0, %s43
    %s46 = sphi 0, %s45
    %s60 = sphi 0, %s46
    %s64 = sphi 0, %s64
    %s66 = sphi 0, %s64
    %s67 = sphi 0, %s66
    %s81 = sphi 0, %s67
    %s87 = sphi 0, %s89
    %s90 = sphi 0, %s87
    %s91 = sphi 0, %s90
    %s107 = sphi 0, %s91
  $region4: #{residual_block_pallas.3} parent=0 // loop_header_branch
    %12 = sbr.rel (%p10) target = $region8
  $region5: #{residual_block_pallas.3} parent=0 // loop_body
    %s14 = ssub.s32 %s9, 1
    %s15 = ssub.s32 %s9, 2
    %s16 = sadd.s32 %s9, 1
    %s17 = ssub.s32 %s9, %s16
    %p18 = scmp.eq.s32.totalorder %s17, 0
    %s20 = sadd.s32 %s19, 1
    %s21 = scalar_select %p18, %s19, %s20
    %p24 = pneg %p18
    %p25 = scmp.eq.s32.totalorder %s9, 1
    %p26 = por %p24, %p25
    %p27 = scmp.ne.s32.totalorder %s19, %s22
    %p28 = scmp.eq.s32.totalorder %s9, 0
    %p29 = por %p27, %p28
    %p30 = scmp.ne.s32.totalorder %s19, %s22
    %p31 = scmp.eq.s32.totalorder %s14, 1
    %p32 = por %p30, %p31
    %p33 = scmp.ne.s32.totalorder %s22, %s23
    %p34 = scmp.eq.s32.totalorder %s14, 0
    %p35 = por %p33, %p34
    %p36 = scmp.ne.s32.totalorder %s22, %s23
    %p37 = scmp.eq.s32.totalorder %s15, 1
    %p38 = por %p36, %p37
    %p40 = scmp.ne.s32.totalorder %s23, %s39
    %p41 = scmp.eq.s32.totalorder %s15, 0
    %p42 = por %p40, %p41
    %s44 = sadd.s32 %s43, 1
    %p47 = scmp.eq.s32.totalorder %s9, 1
    %p48 = scmp.ne.s32.totalorder %s43, %s45
    %p49 = scmp.eq.s32.totalorder %s9, 0
    %p50 = por %p48, %p49
    %p51 = scmp.ne.s32.totalorder %s43, %s45
    %p52 = scmp.eq.s32.totalorder %s14, 1
    %p53 = por %p51, %p52
    %p54 = scmp.ne.s32.totalorder %s45, %s46
    %p55 = scmp.eq.s32.totalorder %s14, 0
    %p56 = por %p54, %p55
    %p57 = scmp.ne.s32.totalorder %s45, %s46
    %p58 = scmp.eq.s32.totalorder %s15, 1
    %p59 = por %p57, %p58
    %p61 = scmp.ne.s32.totalorder %s46, %s60
    %p62 = scmp.eq.s32.totalorder %s15, 0
    %p63 = por %p61, %p62
    %s65 = sadd.s32 %s64, 1
    %p68 = scmp.eq.s32.totalorder %s9, 1
    %p69 = scmp.ne.s32.totalorder %s64, %s66
    %p70 = scmp.eq.s32.totalorder %s9, 0
    %p71 = por %p69, %p70
    %p72 = scmp.ne.s32.totalorder %s64, %s66
    %p73 = scmp.eq.s32.totalorder %s14, 1
    %p74 = por %p72, %p73
    %p75 = scmp.ne.s32.totalorder %s66, %s67
    %p76 = scmp.eq.s32.totalorder %s14, 0
    %p77 = por %p75, %p76
    %p78 = scmp.ne.s32.totalorder %s66, %s67
    %p79 = scmp.eq.s32.totalorder %s15, 1
    %p80 = por %p78, %p79
    %p82 = scmp.ne.s32.totalorder %s67, %s81
    %p83 = scmp.eq.s32.totalorder %s15, 0
    %p84 = por %p82, %p83
    %s85 = ssub.s32 %s9, %s16
    %p86 = scmp.eq.s32.totalorder %s85, 0
    %s88 = sadd.s32 %s87, 1
    %s89 = scalar_select %p86, %s87, %s88
    %p92 = pneg %p86
    %p93 = scmp.eq.s32.totalorder %s9, 1
    %p94 = por %p92, %p93
    %p95 = scmp.ne.s32.totalorder %s87, %s90
    %p96 = scmp.eq.s32.totalorder %s9, 0
    %p97 = por %p95, %p96
    %p98 = scmp.ne.s32.totalorder %s87, %s90
    %p99 = scmp.eq.s32.totalorder %s14, 1
    %p100 = por %p98, %p99
    %p101 = scmp.ne.s32.totalorder %s90, %s91
    %p102 = scmp.eq.s32.totalorder %s14, 0
    %p103 = por %p101, %p102
    %p104 = scmp.ne.s32.totalorder %s90, %s91
    %p105 = scmp.eq.s32.totalorder %s15, 1
    %p106 = por %p104, %p105
    %p108 = scmp.ne.s32.totalorder %s91, %s107
    %p109 = scmp.eq.s32.totalorder %s15, 0
    %p110 = por %p108, %p109
    %p111 = scmp.le.s32.totalorder 1, %s9
    %p112 = scmp.lt.s32.totalorder %s9, 3
    %p113 = pnand %p111, %p112
    %p114 = pneg %p113
    // Predicated region
    $region9: #{residual_block_pallas.3} parent=5 // pred_check
      _
    $region10: #{residual_block_pallas.3} parent=5 // pred_check_branch
      %116 = sbr.rel (%p113) target = $region12
    $region11: #{residual_block_pallas.3} parent=5 // pred_region
      %s117 = ssub.s32 %s9, 1
      // Predicated region
      $region13: #{residual_block_pallas.3} parent=11 // pred_check
        %p118 = pneg %p56
      $region14: #{residual_block_pallas.3} parent=11 // pred_check_branch
        %120 = sbr.rel (%p118) target = $region16
      $region15: #{residual_block_pallas.3} parent=11 // pred_region
        _
      $region16: #{residual_block_pallas.3} parent=11 // pred_fallthru
        _
      // Predicated region
      $region17: #{residual_block_pallas.3} parent=11 // pred_check
        %p121 = pneg %p77
      $region18: #{residual_block_pallas.3} parent=11 // pred_check_branch
        %123 = sbr.rel (%p121) target = $region20
      $region19: #{residual_block_pallas.3} parent=11 // pred_region
        _
      $region20: #{residual_block_pallas.3} parent=11 // pred_fallthru
        _
    $region12: #{residual_block_pallas.3} parent=5 // pred_fallthru
      _
    %p124 = scmp.lt.s32.totalorder %s9, 2
    // Predicated region
    $region21: #{residual_block_pallas.3} parent=5 // pred_check
      %p125 = pneg %p124
    $region22: #{residual_block_pallas.3} parent=5 // pred_check_branch
      %127 = sbr.rel (%p125) target = $region24
    $region23: #{residual_block_pallas.3} parent=5 // pred_region
      // Predicated region
      $region25: #{residual_block_pallas.3} parent=23 // pred_check
        %p128 = pneg %p29
      $region26: #{residual_block_pallas.3} parent=23 // pred_check_branch
        %130 = sbr.rel (%p128) target = $region28
      $region27: #{residual_block_pallas.3} parent=23 // pred_region
        %p131 = scmp.lt.s32.totalorder %s9, 1
        %s132 = scalar_select %p131, %s9, 1
        %s133 = smul.addr %s132, 2
        %s134 = scalar_lea.vmem %s0, %s133
      $region28: #{residual_block_pallas.3} parent=23 // pred_fallthru
        _
    $region24: #{residual_block_pallas.3} parent=5 // pred_fallthru
      _
    %p135 = scmp.le.s32.totalorder 1, %s9
    %p136 = scmp.lt.s32.totalorder %s9, 3
    %p137 = pnand %p135, %p136
    %p138 = pneg %p137
    // Predicated region
    $region29: #{residual_block_pallas.3} parent=5 // pred_check
      _
    $region30: #{residual_block_pallas.3} parent=5 // pred_check_branch
      %140 = sbr.rel (%p137) target = $region32
    $region31: #{residual_block_pallas.3} parent=5 // pred_region
      %s141 = ssub.s32 %s9, 1
      %p142 = scmp.lt.s32.totalorder %s14, 1
      %s143 = scalar_select %p142, %s14, 1
      %s144 = smul.addr %s143, 2
      %s145 = scalar_lea.vmem %s0, %s144
      %p146 = pneg %p35
      %p147 = pneg %p32
      %p148 = pneg %p56
      %p149 = pneg %p53
      %p150 = pneg %p77
      %p151 = pneg %p74
      %p152 = pneg %p103
      %p153 = pneg %p100
      %p154 = scmp.lt.s32.totalorder %s14, 1
      %s155 = scalar_select %p154, %s14, 1
      %s156 = smul.addr %s155, 8
      %s157 = scalar_lea.vmem %s3, %s156
      %p158 = scmp.lt.s32.totalorder %s14, 1
      %s159 = scalar_select %p158, %s14, 1
      %s160 = smul.addr %s159, 2
      %s161 = scalar_lea.vmem %s0, %s160
      %p162 = scmp.lt.s32.totalorder %s14, 1
      %s163 = scalar_select %p162, %s14, 1
      %s164 = smul.addr %s163, 8
      %s165 = scalar_lea.vmem %s3, %s164
      %v167 = vld [vmem:[%s161] sm:$0x3]
      %v168 = vld [vmem:[%s1] sm:$0xf]
      %vm169 = vcmask 31744
      %v171 = vsel %vm169, %v168, 0
      %vm173 = vcmask 1041408
      %v175 = vsel %vm173, %v167, 0
      %177 = vmatprep.subr.bf16.mxu0 0
      %178 = vmatpush1.bf16.msra.mxu0 0
      %179 = vmatprep.subr.bf16.mxu0 0
      %180 = vmatpush1.bf16.msra.mxu0 0
      %181 = vmatprep.subr.bf16.mxu0 0
      %182 = vmatpush1.bf16.msra.mxu0 0
      %183 = vmatprep.subr.bf16.mxu0 0
      %184 = vmatpush1.bf16.msra.mxu0 0
      %185 = vmatprep.subr.bf16.mxu0 0
      %186 = vmatpush1.bf16.msra.mxu0 0
      %187 = vmatprep.subr.bf16.mxu0 0
      %188 = vmatpush1.bf16.msra.mxu0 0
      %189 = vmatprep.subr.bf16.mxu0 0
      %190 = vmatpush1.bf16.msra.mxu0 0
      %191 = vmatprep.subr.bf16.mxu0 0
      %192 = vmatpush1.bf16.msra.mxu0 %v175
      %193 = vmatprep.subr.bf16.mxu0 0
      %194 = vmatpush2.bf16.msra.mxu0 0
      %195 = vmatprep.subr.bf16.mxu0 0
      %196 = vmatpush2.bf16.msra.mxu0 0
      %197 = vmatprep.subr.bf16.mxu0 0
      %198 = vmatpush2.bf16.msra.mxu0 0
      %199 = vmatprep.subr.bf16.mxu0 0
      %200 = vmatpush2.bf16.msra.mxu0 0
      %201 = vmatprep.subr.bf16.mxu0 0
      %202 = vmatpush2.bf16.msra.mxu0 0
      %203 = vmatprep.subr.bf16.mxu0 0
      %204 = vmatpush2.bf16.msra.mxu0 0
      %205 = vmatprep.subr.bf16.mxu0 0
      %206 = vmatpush2.bf16.msra.mxu0 0
      %207 = vmatprep.subr.bf16.mxu0 0
      %208 = vmatpush2.bf16.msra.mxu0 0
      %209 = vmatprep.mubr.bf16.mxu0 0
      %210 = vmatmul.mubr.bf16.gmra.mxu0 %v171
      %v211 = vpop.f32.mrf.mxu0
      %v212 = vadd.f32 0.0, %v211
      %v213 = vpop.f32.mrf.mxu0
      %v214 = vpop.f32.mrf.mxu0
      %v215 = vpop.f32.mrf.mxu0
      %216 = vdwg.mxu0
      %s217 = scalar_lea.vmem %s1, 4
      %v218 = vld [vmem:[%s217] sm:$0xf]
      %v220 = vsel %vm169, %v218, 0
      %222 = vmatprep.subr.bf16.mxu0 0
      %223 = vmatpush1.bf16.msra.mxu0 0
      %224 = vmatprep.subr.bf16.mxu0 0
      %225 = vmatpush1.bf16.msra.mxu0 0
      %226 = vmatprep.subr.bf16.mxu0 0
      %227 = vmatpush1.bf16.msra.mxu0 0
      %228 = vmatprep.subr.bf16.mxu0 0
      %229 = vmatpush1.bf16.msra.mxu0 0
      %230 = vmatprep.subr.bf16.mxu0 0
      %231 = vmatpush1.bf16.msra.mxu0 0
      %232 = vmatprep.subr.bf16.mxu0 0
      %233 = vmatpush1.bf16.msra.mxu0 0
      %234 = vmatprep.subr.bf16.mxu0 0
      %235 = vmatpush1.bf16.msra.mxu0 0
      %236 = vmatprep.subr.bf16.mxu0 0
      %237 = vmatpush1.bf16.msra.mxu0 %v175
      %238 = vmatprep.subr.bf16.mxu0 0
      %239 = vmatpush2.bf16.msra.mxu0 0
      %240 = vmatprep.subr.bf16.mxu0 0
      %241 = vmatpush2.bf16.msra.mxu0 0
      %242 = vmatprep.subr.bf16.mxu0 0
      %243 = vmatpush2.bf16.msra.mxu0 0
      %244 = vmatprep.subr.bf16.mxu0 0
      %245 = vmatpush2.bf16.msra.mxu0 0
      %246 = vmatprep.subr.bf16.mxu0 0
      %247 = vmatpush2.bf16.msra.mxu0 0
      %248 = vmatprep.subr.bf16.mxu0 0
      %249 = vmatpush2.bf16.msra.mxu0 0
      %250 = vmatprep.subr.bf16.mxu0 0
      %251 = vmatpush2.bf16.msra.mxu0 0
      %252 = vmatprep.subr.bf16.mxu0 0
      %253 = vmatpush2.bf16.msra.mxu0 0
      %254 = vmatprep.mubr.bf16.mxu0 0
      %255 = vmatmul.mubr.bf16.gmra.mxu0 %v220
      %v256 = vpop.f32.mrf.mxu0
      %v257 = vadd.f32 0.0, %v256
      %v258 = vpop.f32.mrf.mxu0
      %v259 = vpop.f32.mrf.mxu0
      %v260 = vpop.f32.mrf.mxu0
      %261 = vdwg.mxu0
      %s262 = scalar_lea.vmem %s1, 8
      %v263 = vld [vmem:[%s262] sm:$0xf]
      %v265 = vsel %vm169, %v263, 0
      %267 = vmatprep.subr.bf16.mxu0 0
      %268 = vmatpush1.bf16.msra.mxu0 0
      %269 = vmatprep.subr.bf16.mxu0 0
      %270 = vmatpush1.bf16.msra.mxu0 0
      %271 = vmatprep.subr.bf16.mxu0 0
      %272 = vmatpush1.bf16.msra.mxu0 0
      %273 = vmatprep.subr.bf16.mxu0 0
      %274 = vmatpush1.bf16.msra.mxu0 0
      %275 = vmatprep.subr.bf16.mxu0 0
      %276 = vmatpush1.bf16.msra.mxu0 0
      %277 = vmatprep.subr.bf16.mxu0 0
      %278 = vmatpush1.bf16.msra.mxu0 0
      %279 = vmatprep.subr.bf16.mxu0 0
      %280 = vmatpush1.bf16.msra.mxu0 0
      %281 = vmatprep.subr.bf16.mxu0 0
      %282 = vmatpush1.bf16.msra.mxu0 %v175
      %283 = vmatprep.subr.bf16.mxu0 0
      %284 = vmatpush2.bf16.msra.mxu0 0
      %285 = vmatprep.subr.bf16.mxu0 0
      %286 = vmatpush2.bf16.msra.mxu0 0
      %287 = vmatprep.subr.bf16.mxu0 0
      %288 = vmatpush2.bf16.msra.mxu0 0
      %289 = vmatprep.subr.bf16.mxu0 0
      %290 = vmatpush2.bf16.msra.mxu0 0
      %291 = vmatprep.subr.bf16.mxu0 0
      %292 = vmatpush2.bf16.msra.mxu0 0
      %293 = vmatprep.subr.bf16.mxu0 0
      %294 = vmatpush2.bf16.msra.mxu0 0
      %295 = vmatprep.subr.bf16.mxu0 0
      %296 = vmatpush2.bf16.msra.mxu0 0
      %297 = vmatprep.subr.bf16.mxu0 0
      %298 = vmatpush2.bf16.msra.mxu0 0
      %299 = vmatprep.mubr.bf16.mxu0 0
      %300 = vmatmul.mubr.bf16.gmra.mxu0 %v265
      %v301 = vpop.f32.mrf.mxu0
      %v302 = vadd.f32 0.0, %v301
      %v303 = vpop.f32.mrf.mxu0
      %v304 = vpop.f32.mrf.mxu0
      %v305 = vpop.f32.mrf.mxu0
      %306 = vdwg.mxu0
      %308 = vrot.lane.b32.xlu0 %v212, 1
      %v309 = vpop.permute.xlu0 %308
      %vm311 = vcmask 7168
      %v312 = vsel %vm311, 0.0, %v309
      %v313 = vadd.f32 %v312, %v257
      %315 = vrot.lane.b32.xlu0 %v302, 127
      %v316 = vpop.permute.xlu0 %315
      %vm318 = vcmask 121856
      %v319 = vsel %vm318, %v316, 0.0
      %v320 = vadd.f32 %v313, %v319
      %v321 = vld [vmem:[%s2] sm:$0xf]
      %v323 = vsel %vm169, %v321, 0
      %325 = vmatprep.subr.bf16.mxu0 0
      %326 = vmatpush1.bf16.msra.mxu0 0
      %327 = vmatprep.subr.bf16.mxu0 0
      %328 = vmatpush1.bf16.msra.mxu0 0
      %329 = vmatprep.subr.bf16.mxu0 0
      %330 = vmatpush1.bf16.msra.mxu0 0
      %331 = vmatprep.subr.bf16.mxu0 0
      %332 = vmatpush1.bf16.msra.mxu0 0
      %333 = vmatprep.subr.bf16.mxu0 0
      %334 = vmatpush1.bf16.msra.mxu0 0
      %335 = vmatprep.subr.bf16.mxu0 0
      %336 = vmatpush1.bf16.msra.mxu0 0
      %337 = vmatprep.subr.bf16.mxu0 0
      %338 = vmatpush1.bf16.msra.mxu0 0
      %339 = vmatprep.subr.bf16.mxu0 0
      %340 = vmatpush1.bf16.msra.mxu0 %v175
      %341 = vmatprep.subr.bf16.mxu0 0
      %342 = vmatpush2.bf16.msra.mxu0 0
      %343 = vmatprep.subr.bf16.mxu0 0
      %344 = vmatpush2.bf16.msra.mxu0 0
      %345 = vmatprep.subr.bf16.mxu0 0
      %346 = vmatpush2.bf16.msra.mxu0 0
      %347 = vmatprep.subr.bf16.mxu0 0
      %348 = vmatpush2.bf16.msra.mxu0 0
      %349 = vmatprep.subr.bf16.mxu0 0
      %350 = vmatpush2.bf16.msra.mxu0 0
      %351 = vmatprep.subr.bf16.mxu0 0
      %352 = vmatpush2.bf16.msra.mxu0 0
      %353 = vmatprep.subr.bf16.mxu0 0
      %354 = vmatpush2.bf16.msra.mxu0 0
      %355 = vmatprep.subr.bf16.mxu0 0
      %356 = vmatpush2.bf16.msra.mxu0 0
      %357 = vmatprep.mubr.bf16.mxu0 0
      %358 = vmatmul.mubr.bf16.gmra.mxu0 %v323
      %v359 = vpop.f32.mrf.mxu0
      %v360 = vadd.f32 0.0, %v359
      %v361 = vpop.f32.mrf.mxu0
      %v362 = vpop.f32.mrf.mxu0
      %v363 = vpop.f32.mrf.mxu0
      %364 = vdwg.mxu0
      %vm365 = vcmask 130048
      %v366 = vsel %vm365, %v320, 0.0
      %367 = vadd.xlane.f32.xlu0 %v366
      %v368 = vpop.xlane.xlu0 %367
      %v369 = vmul.f32 %v320, %v320
      %v370 = vsel %vm365, %v369, 0.0
      %371 = vadd.xlane.f32.xlu0 %v370
      %v372 = vpop.xlane.xlu0 %371
      %v373 = vsel %vm365, %v360, 0.0
      %374 = vadd.xlane.f32.xlu0 %v373
      %v375 = vpop.xlane.xlu0 %374
      %v376 = vmul.f32 %v360, %v360
      %v377 = vsel %vm365, %v376, 0.0
      %378 = vadd.xlane.f32.xlu0 %v377
      %v379 = vpop.xlane.xlu0 %378
      %v380 = vsel %vm311, %v368, %v372
      %vm381 = vcmask 15360
      %v382 = vsel %vm381, %v380, %v375
      %vm383 = vcmask 23552
      %v384 = vsel %vm383, %v382, %v379
      %385 = vst.msk [vmem:[%s165] sm:$0xff] %vm169, %v384
      %p386 = scmp.lt.s32.totalorder %s14, 1
      %s387 = scalar_select %p386, %s14, 1
      %s388 = smul.addr %s387, 8
      %s389 = scalar_lea.vmem %s3, %s388
      // Predicated region
      $region33: #{residual_block_pallas.3} parent=31 // pred_check
        %p390 = pneg %p100
      $region34: #{residual_block_pallas.3} parent=31 // pred_check_branch
        %392 = sbr.rel (%p390) target = $region36
      $region35: #{residual_block_pallas.3} parent=31 // pred_region
        _
      $region36: #{residual_block_pallas.3} parent=31 // pred_fallthru
        _
    $region32: #{residual_block_pallas.3} parent=5 // pred_fallthru
      _
    %p393 = scmp.le.s32.totalorder 2, %s9
    // Predicated region
    $region37: #{residual_block_pallas.3} parent=5 // pred_check
      %p394 = pneg %p393
    $region38: #{residual_block_pallas.3} parent=5 // pred_check_branch
      %396 = sbr.rel (%p394) target = $region40
    $region39: #{residual_block_pallas.3} parent=5 // pred_region
      %s397 = ssub.s32 %s9, 2
      // Predicated region
      $region41: #{residual_block_pallas.3} parent=39 // pred_check
        %p398 = pneg %p106
      $region42: #{residual_block_pallas.3} parent=39 // pred_check_branch
        %400 = sbr.rel (%p398) target = $region44
      $region43: #{residual_block_pallas.3} parent=39 // pred_region
        %p401 = scmp.lt.s32.totalorder %s15, 1
        %s402 = scalar_select %p401, %s15, 1
        %s403 = smul.addr %s402, 8
        %s404 = scalar_lea.vmem %s3, %s403
      $region44: #{residual_block_pallas.3} parent=39 // pred_fallthru
        _
    $region40: #{residual_block_pallas.3} parent=5 // pred_fallthru
      _
  $region6: #{residual_block_pallas.3} parent=0 // loop_footer
    %s13 = sadd.s32 1, %s9
  $region7: #{residual_block_pallas.3} parent=0 // loop_footer_branch
    %8 = sbr.rel target = $region3
  $region8: #{residual_block_pallas.3} parent=0 // loop_exit
    _

// kernel: residual_block_pallas.4
$region0: #{residual_block_pallas.4}
  #allocation0 [shape = 'u32[]', space=smem, size = 0x4, offset = 0x4, fixed_abs, tag = 'smem constant byte address 0x4 - core index']
  #allocation1 [shape = 'u32[144,128]{1,0:T(1,128)}', space=vmem, size = 0x12000, scoped, tag = 'internal scratch']
  %s0 = inlined_call_operand.vmem [shape: bf16[2,4,16], index: 0, kind: input, shape index: {}]
  %s1 = inlined_call_operand.vmem [shape: bf16[3,8,4], index: 1, kind: input, shape index: {}]
  %s2 = inlined_call_operand.vmem [shape: bf16[3,8,8], index: 2, kind: input, shape index: {}]
  %s3 = inlined_call_operand.vmem [shape: f32[8,2], index: 3, kind: input, shape index: {}]
  %s4 = inlined_call_operand.vmem [shape: f32[2,8,2], index: 4, kind: output, shape index: {}]
  %s5 = sld [smem:[#allocation0]]
  $region49: #{residual_block_pallas.4} parent=0
    _
  %s7 = ssub.s32 1, %s5
  %s8 = scalar_select 0, %s7, %s5
  loop: start=0, step=1, limit=4
  $region2: #{residual_block_pallas.4} parent=0 // loop_pre_header
    _
  $region3: #{residual_block_pallas.4} parent=0 // loop_header
    %s10 = sphi 0, %s14
    %p11 = scmp.ge.s32.totalorder %s10, 4
    %s20 = sphi 0, %s22
    %s23 = sphi 0, %s20
    %s24 = sphi 0, %s23
    %s40 = sphi 0, %s24
    %s44 = sphi 0, %s44
    %s46 = sphi 0, %s44
    %s47 = sphi 0, %s46
    %s61 = sphi 0, %s47
    %s65 = sphi 0, %s65
    %s67 = sphi 0, %s65
    %s68 = sphi 0, %s67
    %s82 = sphi 0, %s68
    %s86 = sphi 0, %s86
    %s88 = sphi 0, %s86
    %s89 = sphi 0, %s88
    %s103 = sphi 0, %s89
    %s109 = sphi 0, %s111
    %s112 = sphi 0, %s109
    %s113 = sphi 0, %s112
    %s129 = sphi 0, %s113
  $region4: #{residual_block_pallas.4} parent=0 // loop_header_branch
    %13 = sbr.rel (%p11) target = $region8
  $region5: #{residual_block_pallas.4} parent=0 // loop_body
    %s15 = ssub.s32 %s10, 1
    %s16 = ssub.s32 %s10, 2
    %s17 = sadd.s32 %s10, 1
    %s18 = ssub.s32 %s10, %s17
    %p19 = scmp.eq.s32.totalorder %s18, 0
    %s21 = sadd.s32 %s20, 1
    %s22 = scalar_select %p19, %s20, %s21
    %p25 = pneg %p19
    %p26 = scmp.eq.s32.totalorder %s10, 1
    %p27 = por %p25, %p26
    %p28 = scmp.ne.s32.totalorder %s20, %s23
    %p29 = scmp.eq.s32.totalorder %s10, 0
    %p30 = por %p28, %p29
    %p31 = scmp.ne.s32.totalorder %s20, %s23
    %p32 = scmp.eq.s32.totalorder %s15, 1
    %p33 = por %p31, %p32
    %p34 = scmp.ne.s32.totalorder %s23, %s24
    %p35 = scmp.eq.s32.totalorder %s15, 0
    %p36 = por %p34, %p35
    %p37 = scmp.ne.s32.totalorder %s23, %s24
    %p38 = scmp.eq.s32.totalorder %s16, 1
    %p39 = por %p37, %p38
    %p41 = scmp.ne.s32.totalorder %s24, %s40
    %p42 = scmp.eq.s32.totalorder %s16, 0
    %p43 = por %p41, %p42
    %s45 = sadd.s32 %s44, 1
    %p48 = scmp.eq.s32.totalorder %s10, 1
    %p49 = scmp.ne.s32.totalorder %s44, %s46
    %p50 = scmp.eq.s32.totalorder %s10, 0
    %p51 = por %p49, %p50
    %p52 = scmp.ne.s32.totalorder %s44, %s46
    %p53 = scmp.eq.s32.totalorder %s15, 1
    %p54 = por %p52, %p53
    %p55 = scmp.ne.s32.totalorder %s46, %s47
    %p56 = scmp.eq.s32.totalorder %s15, 0
    %p57 = por %p55, %p56
    %p58 = scmp.ne.s32.totalorder %s46, %s47
    %p59 = scmp.eq.s32.totalorder %s16, 1
    %p60 = por %p58, %p59
    %p62 = scmp.ne.s32.totalorder %s47, %s61
    %p63 = scmp.eq.s32.totalorder %s16, 0
    %p64 = por %p62, %p63
    %s66 = sadd.s32 %s65, 1
    %p69 = scmp.eq.s32.totalorder %s10, 1
    %p70 = scmp.ne.s32.totalorder %s65, %s67
    %p71 = scmp.eq.s32.totalorder %s10, 0
    %p72 = por %p70, %p71
    %p73 = scmp.ne.s32.totalorder %s65, %s67
    %p74 = scmp.eq.s32.totalorder %s15, 1
    %p75 = por %p73, %p74
    %p76 = scmp.ne.s32.totalorder %s67, %s68
    %p77 = scmp.eq.s32.totalorder %s15, 0
    %p78 = por %p76, %p77
    %p79 = scmp.ne.s32.totalorder %s67, %s68
    %p80 = scmp.eq.s32.totalorder %s16, 1
    %p81 = por %p79, %p80
    %p83 = scmp.ne.s32.totalorder %s68, %s82
    %p84 = scmp.eq.s32.totalorder %s16, 0
    %p85 = por %p83, %p84
    %s87 = sadd.s32 %s86, 1
    %p90 = scmp.eq.s32.totalorder %s10, 1
    %p91 = scmp.ne.s32.totalorder %s86, %s88
    %p92 = scmp.eq.s32.totalorder %s10, 0
    %p93 = por %p91, %p92
    %p94 = scmp.ne.s32.totalorder %s86, %s88
    %p95 = scmp.eq.s32.totalorder %s15, 1
    %p96 = por %p94, %p95
    %p97 = scmp.ne.s32.totalorder %s88, %s89
    %p98 = scmp.eq.s32.totalorder %s15, 0
    %p99 = por %p97, %p98
    %p100 = scmp.ne.s32.totalorder %s88, %s89
    %p101 = scmp.eq.s32.totalorder %s16, 1
    %p102 = por %p100, %p101
    %p104 = scmp.ne.s32.totalorder %s89, %s103
    %p105 = scmp.eq.s32.totalorder %s16, 0
    %p106 = por %p104, %p105
    %s107 = ssub.s32 %s10, %s17
    %p108 = scmp.eq.s32.totalorder %s107, 0
    %s110 = sadd.s32 %s109, 1
    %s111 = scalar_select %p108, %s109, %s110
    %p114 = pneg %p108
    %p115 = scmp.eq.s32.totalorder %s10, 1
    %p116 = por %p114, %p115
    %p117 = scmp.ne.s32.totalorder %s109, %s112
    %p118 = scmp.eq.s32.totalorder %s10, 0
    %p119 = por %p117, %p118
    %p120 = scmp.ne.s32.totalorder %s109, %s112
    %p121 = scmp.eq.s32.totalorder %s15, 1
    %p122 = por %p120, %p121
    %p123 = scmp.ne.s32.totalorder %s112, %s113
    %p124 = scmp.eq.s32.totalorder %s15, 0
    %p125 = por %p123, %p124
    %p126 = scmp.ne.s32.totalorder %s112, %s113
    %p127 = scmp.eq.s32.totalorder %s16, 1
    %p128 = por %p126, %p127
    %p130 = scmp.ne.s32.totalorder %s113, %s129
    %p131 = scmp.eq.s32.totalorder %s16, 0
    %p132 = por %p130, %p131
    %p133 = scmp.le.s32.totalorder 1, %s10
    %p134 = scmp.lt.s32.totalorder %s10, 3
    %p135 = pnand %p133, %p134
    %p136 = pneg %p135
    // Predicated region
    $region9: #{residual_block_pallas.4} parent=5 // pred_check
      _
    $region10: #{residual_block_pallas.4} parent=5 // pred_check_branch
      %138 = sbr.rel (%p135) target = $region12
    $region11: #{residual_block_pallas.4} parent=5 // pred_region
      %s139 = ssub.s32 %s10, 1
      // Predicated region
      $region13: #{residual_block_pallas.4} parent=11 // pred_check
        %p140 = pneg %p57
      $region14: #{residual_block_pallas.4} parent=11 // pred_check_branch
        %142 = sbr.rel (%p140) target = $region16
      $region15: #{residual_block_pallas.4} parent=11 // pred_region
        _
      $region16: #{residual_block_pallas.4} parent=11 // pred_fallthru
        _
      // Predicated region
      $region17: #{residual_block_pallas.4} parent=11 // pred_check
        %p143 = pneg %p78
      $region18: #{residual_block_pallas.4} parent=11 // pred_check_branch
        %145 = sbr.rel (%p143) target = $region20
      $region19: #{residual_block_pallas.4} parent=11 // pred_region
        _
      $region20: #{residual_block_pallas.4} parent=11 // pred_fallthru
        _
      // Predicated region
      $region21: #{residual_block_pallas.4} parent=11 // pred_check
        %p146 = pneg %p99
      $region22: #{residual_block_pallas.4} parent=11 // pred_check_branch
        %148 = sbr.rel (%p146) target = $region24
      $region23: #{residual_block_pallas.4} parent=11 // pred_region
        _
      $region24: #{residual_block_pallas.4} parent=11 // pred_fallthru
        _
    $region12: #{residual_block_pallas.4} parent=5 // pred_fallthru
      _
    %p149 = scmp.lt.s32.totalorder %s10, 2
    // Predicated region
    $region25: #{residual_block_pallas.4} parent=5 // pred_check
      %p150 = pneg %p149
    $region26: #{residual_block_pallas.4} parent=5 // pred_check_branch
      %152 = sbr.rel (%p150) target = $region28
    $region27: #{residual_block_pallas.4} parent=5 // pred_region
      // Predicated region
      $region29: #{residual_block_pallas.4} parent=27 // pred_check
        %p153 = pneg %p30
      $region30: #{residual_block_pallas.4} parent=27 // pred_check_branch
        %155 = sbr.rel (%p153) target = $region32
      $region31: #{residual_block_pallas.4} parent=27 // pred_region
        %p156 = scmp.lt.s32.totalorder %s10, 1
        %s157 = scalar_select %p156, %s10, 1
        %s158 = smul.addr %s157, 2
        %s159 = scalar_lea.vmem %s0, %s158
      $region32: #{residual_block_pallas.4} parent=27 // pred_fallthru
        _
    $region28: #{residual_block_pallas.4} parent=5 // pred_fallthru
      _
    %p160 = scmp.le.s32.totalorder 1, %s10
    %p161 = scmp.lt.s32.totalorder %s10, 3
    %p162 = pnand %p160, %p161
    %p163 = pneg %p162
    // Predicated region
    $region33: #{residual_block_pallas.4} parent=5 // pred_check
      _
    $region34: #{residual_block_pallas.4} parent=5 // pred_check_branch
      %165 = sbr.rel (%p162) target = $region36
    $region35: #{residual_block_pallas.4} parent=5 // pred_region
      %s166 = ssub.s32 %s10, 1
      %p167 = scmp.lt.s32.totalorder %s15, 1
      %s168 = scalar_select %p167, %s15, 1
      %s169 = smul.addr %s168, 2
      %s170 = scalar_lea.vmem %s0, %s169
      %p171 = pneg %p36
      %p172 = pneg %p33
      %p173 = pneg %p57
      %p174 = pneg %p54
      %p175 = pneg %p78
      %p176 = pneg %p75
      %p177 = pneg %p99
      %p178 = pneg %p96
      %p179 = pneg %p125
      %p180 = pneg %p122
      %p181 = scmp.lt.s32.totalorder %s15, 1
      %s182 = scalar_select %p181, %s15, 1
      %s183 = smul.addr %s182, 8
      %s184 = scalar_lea.vmem %s4, %s183
      %p185 = scmp.lt.s32.totalorder %s15, 1
      %s186 = scalar_select %p185, %s15, 1
      %s187 = smul.addr %s186, 2
      %s188 = scalar_lea.vmem %s0, %s187
      %p189 = scmp.lt.s32.totalorder %s15, 1
      %s190 = scalar_select %p189, %s15, 1
      %s191 = smul.addr %s190, 8
      %s192 = scalar_lea.vmem %s4, %s191
      %v194 = vld [vmem:[%s188] sm:$0x3]
      %v195 = vld [vmem:[%s1] sm:$0xf]
      %vm196 = vcmask 31744
      %v198 = vsel %vm196, %v195, 0
      %vm200 = vcmask 1041408
      %v202 = vsel %vm200, %v194, 0
      %204 = vmatprep.subr.bf16.mxu0 0
      %205 = vmatpush1.bf16.msra.mxu0 0
      %206 = vmatprep.subr.bf16.mxu0 0
      %207 = vmatpush1.bf16.msra.mxu0 0
      %208 = vmatprep.subr.bf16.mxu0 0
      %209 = vmatpush1.bf16.msra.mxu0 0
      %210 = vmatprep.subr.bf16.mxu0 0
      %211 = vmatpush1.bf16.msra.mxu0 0
      %212 = vmatprep.subr.bf16.mxu0 0
      %213 = vmatpush1.bf16.msra.mxu0 0
      %214 = vmatprep.subr.bf16.mxu0 0
      %215 = vmatpush1.bf16.msra.mxu0 0
      %216 = vmatprep.subr.bf16.mxu0 0
      %217 = vmatpush1.bf16.msra.mxu0 0
      %218 = vmatprep.subr.bf16.mxu0 0
      %219 = vmatpush1.bf16.msra.mxu0 %v202
      %220 = vmatprep.subr.bf16.mxu0 0
      %221 = vmatpush2.bf16.msra.mxu0 0
      %222 = vmatprep.subr.bf16.mxu0 0
      %223 = vmatpush2.bf16.msra.mxu0 0
      %224 = vmatprep.subr.bf16.mxu0 0
      %225 = vmatpush2.bf16.msra.mxu0 0
      %226 = vmatprep.subr.bf16.mxu0 0
      %227 = vmatpush2.bf16.msra.mxu0 0
      %228 = vmatprep.subr.bf16.mxu0 0
      %229 = vmatpush2.bf16.msra.mxu0 0
      %230 = vmatprep.subr.bf16.mxu0 0
      %231 = vmatpush2.bf16.msra.mxu0 0
      %232 = vmatprep.subr.bf16.mxu0 0
      %233 = vmatpush2.bf16.msra.mxu0 0
      %234 = vmatprep.subr.bf16.mxu0 0
      %235 = vmatpush2.bf16.msra.mxu0 0
      %236 = vmatprep.mubr.bf16.mxu0 0
      %237 = vmatmul.mubr.bf16.gmra.mxu0 %v198
      %v238 = vpop.f32.mrf.mxu0
      %v239 = vadd.f32 0.0, %v238
      %v240 = vpop.f32.mrf.mxu0
      %v241 = vpop.f32.mrf.mxu0
      %v242 = vpop.f32.mrf.mxu0
      %243 = vdwg.mxu0
      %s244 = scalar_lea.vmem %s1, 4
      %v245 = vld [vmem:[%s244] sm:$0xf]
      %v247 = vsel %vm196, %v245, 0
      %249 = vmatprep.subr.bf16.mxu0 0
      %250 = vmatpush1.bf16.msra.mxu0 0
      %251 = vmatprep.subr.bf16.mxu0 0
      %252 = vmatpush1.bf16.msra.mxu0 0
      %253 = vmatprep.subr.bf16.mxu0 0
      %254 = vmatpush1.bf16.msra.mxu0 0
      %255 = vmatprep.subr.bf16.mxu0 0
      %256 = vmatpush1.bf16.msra.mxu0 0
      %257 = vmatprep.subr.bf16.mxu0 0
      %258 = vmatpush1.bf16.msra.mxu0 0
      %259 = vmatprep.subr.bf16.mxu0 0
      %260 = vmatpush1.bf16.msra.mxu0 0
      %261 = vmatprep.subr.bf16.mxu0 0
      %262 = vmatpush1.bf16.msra.mxu0 0
      %263 = vmatprep.subr.bf16.mxu0 0
      %264 = vmatpush1.bf16.msra.mxu0 %v202
      %265 = vmatprep.subr.bf16.mxu0 0
      %266 = vmatpush2.bf16.msra.mxu0 0
      %267 = vmatprep.subr.bf16.mxu0 0
      %268 = vmatpush2.bf16.msra.mxu0 0
      %269 = vmatprep.subr.bf16.mxu0 0
      %270 = vmatpush2.bf16.msra.mxu0 0
      %271 = vmatprep.subr.bf16.mxu0 0
      %272 = vmatpush2.bf16.msra.mxu0 0
      %273 = vmatprep.subr.bf16.mxu0 0
      %274 = vmatpush2.bf16.msra.mxu0 0
      %275 = vmatprep.subr.bf16.mxu0 0
      %276 = vmatpush2.bf16.msra.mxu0 0
      %277 = vmatprep.subr.bf16.mxu0 0
      %278 = vmatpush2.bf16.msra.mxu0 0
      %279 = vmatprep.subr.bf16.mxu0 0
      %280 = vmatpush2.bf16.msra.mxu0 0
      %281 = vmatprep.mubr.bf16.mxu0 0
      %282 = vmatmul.mubr.bf16.gmra.mxu0 %v247
      %v283 = vpop.f32.mrf.mxu0
      %v284 = vadd.f32 0.0, %v283
      %v285 = vpop.f32.mrf.mxu0
      %v286 = vpop.f32.mrf.mxu0
      %v287 = vpop.f32.mrf.mxu0
      %288 = vdwg.mxu0
      %s289 = scalar_lea.vmem %s1, 8
      %v290 = vld [vmem:[%s289] sm:$0xf]
      %v292 = vsel %vm196, %v290, 0
      %294 = vmatprep.subr.bf16.mxu0 0
      %295 = vmatpush1.bf16.msra.mxu0 0
      %296 = vmatprep.subr.bf16.mxu0 0
      %297 = vmatpush1.bf16.msra.mxu0 0
      %298 = vmatprep.subr.bf16.mxu0 0
      %299 = vmatpush1.bf16.msra.mxu0 0
      %300 = vmatprep.subr.bf16.mxu0 0
      %301 = vmatpush1.bf16.msra.mxu0 0
      %302 = vmatprep.subr.bf16.mxu0 0
      %303 = vmatpush1.bf16.msra.mxu0 0
      %304 = vmatprep.subr.bf16.mxu0 0
      %305 = vmatpush1.bf16.msra.mxu0 0
      %306 = vmatprep.subr.bf16.mxu0 0
      %307 = vmatpush1.bf16.msra.mxu0 0
      %308 = vmatprep.subr.bf16.mxu0 0
      %309 = vmatpush1.bf16.msra.mxu0 %v202
      %310 = vmatprep.subr.bf16.mxu0 0
      %311 = vmatpush2.bf16.msra.mxu0 0
      %312 = vmatprep.subr.bf16.mxu0 0
      %313 = vmatpush2.bf16.msra.mxu0 0
      %314 = vmatprep.subr.bf16.mxu0 0
      %315 = vmatpush2.bf16.msra.mxu0 0
      %316 = vmatprep.subr.bf16.mxu0 0
      %317 = vmatpush2.bf16.msra.mxu0 0
      %318 = vmatprep.subr.bf16.mxu0 0
      %319 = vmatpush2.bf16.msra.mxu0 0
      %320 = vmatprep.subr.bf16.mxu0 0
      %321 = vmatpush2.bf16.msra.mxu0 0
      %322 = vmatprep.subr.bf16.mxu0 0
      %323 = vmatpush2.bf16.msra.mxu0 0
      %324 = vmatprep.subr.bf16.mxu0 0
      %325 = vmatpush2.bf16.msra.mxu0 0
      %326 = vmatprep.mubr.bf16.mxu0 0
      %327 = vmatmul.mubr.bf16.gmra.mxu0 %v292
      %v328 = vpop.f32.mrf.mxu0
      %v329 = vadd.f32 0.0, %v328
      %v330 = vpop.f32.mrf.mxu0
      %v331 = vpop.f32.mrf.mxu0
      %v332 = vpop.f32.mrf.mxu0
      %333 = vdwg.mxu0
      %335 = vrot.lane.b32.xlu0 %v239, 1
      %v336 = vpop.permute.xlu0 %335
      %vm338 = vcmask 7168
      %v339 = vsel %vm338, 0.0, %v336
      %v340 = vadd.f32 %v339, %v284
      %342 = vrot.lane.b32.xlu0 %v329, 127
      %v343 = vpop.permute.xlu0 %342
      %vm345 = vcmask 121856
      %v346 = vsel %vm345, %v343, 0.0
      %v347 = vadd.f32 %v340, %v346
      %v348 = vld [vmem:[%s3] sm:$0xff]
      %350 = vset.pattern.permute.xlu0 0
      %351 = vperm.xlu0 %350, %v348
      %v352 = vpop.permute.xlu0 %351
      %v354 = vmul.f32 %v347, %v352
      %355 = vset.pattern.permute.xlu0 1
      %356 = vperm.xlu0 %355, %v348
      %v357 = vpop.permute.xlu0 %356
      %v359 = vadd.f32 %v354, %v357
      %v360 = vmax.f32 %v359, 0.0
      %v361 = vpack.c.bf16 %v360, %v360
      %v362 = vld [vmem:[%s2] sm:$0xf]
      %vm363 = vcmask 64512
      %v365 = vsel %vm363, %v362, 0
      %vm367 = vcmask 1043456
      %v369 = vsel %vm367, %v361, 0
      %371 = vmatprep.subr.bf16.mxu0 0
      %372 = vmatpush1.bf16.msra.mxu0 0
      %373 = vmatprep.subr.bf16.mxu0 0
      %374 = vmatpush1.bf16.msra.mxu0 0
      %375 = vmatprep.subr.bf16.mxu0 0
      %376 = vmatpush1.bf16.msra.mxu0 0
      %377 = vmatprep.subr.bf16.mxu0 0
      %378 = vmatpush1.bf16.msra.mxu0 0
      %379 = vmatprep.subr.bf16.mxu0 0
      %380 = vmatpush1.bf16.msra.mxu0 0
      %381 = vmatprep.subr.bf16.mxu0 0
      %382 = vmatpush1.bf16.msra.mxu0 0
      %383 = vmatprep.subr.bf16.mxu0 0
      %384 = vmatpush1.bf16.msra.mxu0 0
      %385 = vmatprep.subr.bf16.mxu0 0
      %386 = vmatpush1.bf16.msra.mxu0 %v369
      %387 = vmatprep.subr.bf16.mxu0 0
      %388 = vmatpush2.bf16.msra.mxu0 0
      %389 = vmatprep.subr.bf16.mxu0 0
      %390 = vmatpush2.bf16.msra.mxu0 0
      %391 = vmatprep.subr.bf16.mxu0 0
      %392 = vmatpush2.bf16.msra.mxu0 0
      %393 = vmatprep.subr.bf16.mxu0 0
      %394 = vmatpush2.bf16.msra.mxu0 0
      %395 = vmatprep.subr.bf16.mxu0 0
      %396 = vmatpush2.bf16.msra.mxu0 0
      %397 = vmatprep.subr.bf16.mxu0 0
      %398 = vmatpush2.bf16.msra.mxu0 0
      %399 = vmatprep.subr.bf16.mxu0 0
      %400 = vmatpush2.bf16.msra.mxu0 0
      %401 = vmatprep.subr.bf16.mxu0 0
      %402 = vmatpush2.bf16.msra.mxu0 0
      %403 = vmatprep.mubr.bf16.mxu0 0
      %404 = vmatmul.mubr.bf16.gmra.mxu0 %v365
      %v405 = vpop.f32.mrf.mxu0
      %v406 = vadd.f32 0.0, %v405
      %v407 = vpop.f32.mrf.mxu0
      %v408 = vpop.f32.mrf.mxu0
      %v409 = vpop.f32.mrf.mxu0
      %410 = vdwg.mxu0
      %s411 = scalar_lea.vmem %s2, 4
      %v412 = vld [vmem:[%s411] sm:$0xf]
      %v414 = vsel %vm363, %v412, 0
      %416 = vmatprep.subr.bf16.mxu0 0
      %417 = vmatpush1.bf16.msra.mxu0 0
      %418 = vmatprep.subr.bf16.mxu0 0
      %419 = vmatpush1.bf16.msra.mxu0 0
      %420 = vmatprep.subr.bf16.mxu0 0
      %421 = vmatpush1.bf16.msra.mxu0 0
      %422 = vmatprep.subr.bf16.mxu0 0
      %423 = vmatpush1.bf16.msra.mxu0 0
      %424 = vmatprep.subr.bf16.mxu0 0
      %425 = vmatpush1.bf16.msra.mxu0 0
      %426 = vmatprep.subr.bf16.mxu0 0
      %427 = vmatpush1.bf16.msra.mxu0 0
      %428 = vmatprep.subr.bf16.mxu0 0
      %429 = vmatpush1.bf16.msra.mxu0 0
      %430 = vmatprep.subr.bf16.mxu0 0
      %431 = vmatpush1.bf16.msra.mxu0 %v369
      %432 = vmatprep.subr.bf16.mxu0 0
      %433 = vmatpush2.bf16.msra.mxu0 0
      %434 = vmatprep.subr.bf16.mxu0 0
      %435 = vmatpush2.bf16.msra.mxu0 0
      %436 = vmatprep.subr.bf16.mxu0 0
      %437 = vmatpush2.bf16.msra.mxu0 0
      %438 = vmatprep.subr.bf16.mxu0 0
      %439 = vmatpush2.bf16.msra.mxu0 0
      %440 = vmatprep.subr.bf16.mxu0 0
      %441 = vmatpush2.bf16.msra.mxu0 0
      %442 = vmatprep.subr.bf16.mxu0 0
      %443 = vmatpush2.bf16.msra.mxu0 0
      %444 = vmatprep.subr.bf16.mxu0 0
      %445 = vmatpush2.bf16.msra.mxu0 0
      %446 = vmatprep.subr.bf16.mxu0 0
      %447 = vmatpush2.bf16.msra.mxu0 0
      %448 = vmatprep.mubr.bf16.mxu0 0
      %449 = vmatmul.mubr.bf16.gmra.mxu0 %v414
      %v450 = vpop.f32.mrf.mxu0
      %v451 = vadd.f32 0.0, %v450
      %v452 = vpop.f32.mrf.mxu0
      %v453 = vpop.f32.mrf.mxu0
      %v454 = vpop.f32.mrf.mxu0
      %455 = vdwg.mxu0
      %s456 = scalar_lea.vmem %s2, 8
      %v457 = vld [vmem:[%s456] sm:$0xf]
      %v459 = vsel %vm363, %v457, 0
      %461 = vmatprep.subr.bf16.mxu0 0
      %462 = vmatpush1.bf16.msra.mxu0 0
      %463 = vmatprep.subr.bf16.mxu0 0
      %464 = vmatpush1.bf16.msra.mxu0 0
      %465 = vmatprep.subr.bf16.mxu0 0
      %466 = vmatpush1.bf16.msra.mxu0 0
      %467 = vmatprep.subr.bf16.mxu0 0
      %468 = vmatpush1.bf16.msra.mxu0 0
      %469 = vmatprep.subr.bf16.mxu0 0
      %470 = vmatpush1.bf16.msra.mxu0 0
      %471 = vmatprep.subr.bf16.mxu0 0
      %472 = vmatpush1.bf16.msra.mxu0 0
      %473 = vmatprep.subr.bf16.mxu0 0
      %474 = vmatpush1.bf16.msra.mxu0 0
      %475 = vmatprep.subr.bf16.mxu0 0
      %476 = vmatpush1.bf16.msra.mxu0 %v369
      %477 = vmatprep.subr.bf16.mxu0 0
      %478 = vmatpush2.bf16.msra.mxu0 0
      %479 = vmatprep.subr.bf16.mxu0 0
      %480 = vmatpush2.bf16.msra.mxu0 0
      %481 = vmatprep.subr.bf16.mxu0 0
      %482 = vmatpush2.bf16.msra.mxu0 0
      %483 = vmatprep.subr.bf16.mxu0 0
      %484 = vmatpush2.bf16.msra.mxu0 0
      %485 = vmatprep.subr.bf16.mxu0 0
      %486 = vmatpush2.bf16.msra.mxu0 0
      %487 = vmatprep.subr.bf16.mxu0 0
      %488 = vmatpush2.bf16.msra.mxu0 0
      %489 = vmatprep.subr.bf16.mxu0 0
      %490 = vmatpush2.bf16.msra.mxu0 0
      %491 = vmatprep.subr.bf16.mxu0 0
      %492 = vmatpush2.bf16.msra.mxu0 0
      %493 = vmatprep.mubr.bf16.mxu0 0
      %494 = vmatmul.mubr.bf16.gmra.mxu0 %v459
      %v495 = vpop.f32.mrf.mxu0
      %v496 = vadd.f32 0.0, %v495
      %v497 = vpop.f32.mrf.mxu0
      %v498 = vpop.f32.mrf.mxu0
      %v499 = vpop.f32.mrf.mxu0
      %500 = vdwg.mxu0
      %502 = vrot.lane.b32.xlu0 %v406, 1
      %v503 = vpop.permute.xlu0 %502
      %v505 = vsel %vm338, 0.0, %v503
      %v506 = vadd.f32 %v505, %v451
      %508 = vrot.lane.b32.xlu0 %v496, 127
      %v509 = vpop.permute.xlu0 %508
      %v511 = vsel %vm345, %v509, 0.0
      %v512 = vadd.f32 %v506, %v511
      %vm513 = vcmask 130048
      %v514 = vsel %vm513, %v512, 0.0
      %515 = vadd.xlane.f32.xlu0 %v514
      %v516 = vpop.xlane.xlu0 %515
      %v517 = vmul.f32 %v512, %v512
      %v518 = vsel %vm513, %v517, 0.0
      %519 = vadd.xlane.f32.xlu0 %v518
      %v520 = vpop.xlane.xlu0 %519
      %v521 = vsel %vm338, %v516, %v520
      %vm522 = vcmask 15360
      %523 = vst.msk [vmem:[%s192] sm:$0xff] %vm522, %v521
      %p524 = scmp.lt.s32.totalorder %s15, 1
      %s525 = scalar_select %p524, %s15, 1
      %s526 = smul.addr %s525, 8
      %s527 = scalar_lea.vmem %s4, %s526
      // Predicated region
      $region37: #{residual_block_pallas.4} parent=35 // pred_check
        %p528 = pneg %p122
      $region38: #{residual_block_pallas.4} parent=35 // pred_check_branch
        %530 = sbr.rel (%p528) target = $region40
      $region39: #{residual_block_pallas.4} parent=35 // pred_region
        _
      $region40: #{residual_block_pallas.4} parent=35 // pred_fallthru
        _
    $region36: #{residual_block_pallas.4} parent=5 // pred_fallthru
      _
    %p531 = scmp.le.s32.totalorder 2, %s10
    // Predicated region
    $region41: #{residual_block_pallas.4} parent=5 // pred_check
      %p532 = pneg %p531
    $region42: #{residual_block_pallas.4} parent=5 // pred_check_branch
      %534 = sbr.rel (%p532) target = $region44
    $region43: #{residual_block_pallas.4} parent=5 // pred_region
      %s535 = ssub.s32 %s10, 2
      // Predicated region
      $region45: #{residual_block_pallas.4} parent=43 // pred_check
        %p536 = pneg %p128
      $region46: #{residual_block_pallas.4} parent=43 // pred_check_branch
        %538 = sbr.rel (%p536) target = $region48
      $region47: #{residual_block_pallas.4} parent=43 // pred_region
        %p539 = scmp.lt.s32.totalorder %s16, 1
        %s540 = scalar_select %p539, %s16, 1
        %s541 = smul.addr %s540, 8
        %s542 = scalar_lea.vmem %s4, %s541
      $region48: #{residual_block_pallas.4} parent=43 // pred_fallthru
        _
    $region44: #{residual_block_pallas.4} parent=5 // pred_fallthru
      _
  $region6: #{residual_block_pallas.4} parent=0 // loop_footer
    %s14 = sadd.s32 1, %s10
  $region7: #{residual_block_pallas.4} parent=0 // loop_footer_branch
    %9 = sbr.rel target = $region3
  $region8: #{residual_block_pallas.4} parent=0 // loop_exit
    _

// kernel: residual_block_pallas.5
$region0: #{residual_block_pallas.5}
  #allocation0 [shape = 'u32[]', space=smem, size = 0x4, offset = 0x4, fixed_abs, tag = 'smem constant byte address 0x4 - core index']
  #allocation1 [shape = 'u32[144,128]{1,0:T(1,128)}', space=vmem, size = 0x12000, scoped, tag = 'internal scratch']
  %s0 = inlined_call_operand.vmem [shape: bf16[2,4,16], index: 0, kind: input, shape index: {}]
  %s1 = inlined_call_operand.vmem [shape: bf16[3,8,4], index: 1, kind: input, shape index: {}]
  %s2 = inlined_call_operand.vmem [shape: bf16[3,8,8], index: 2, kind: input, shape index: {}]
  %s3 = inlined_call_operand.vmem [shape: bf16[8,4], index: 3, kind: input, shape index: {}]
  %s4 = inlined_call_operand.vmem [shape: f32[8,2], index: 4, kind: input, shape index: {}]
  %s5 = inlined_call_operand.vmem [shape: f32[8,2], index: 5, kind: input, shape index: {}]
  %s6 = inlined_call_operand.vmem [shape: f32[8,2], index: 6, kind: input, shape index: {}]
  %s7 = inlined_call_operand.hbm [shape: f32[2,8,16], index: 7, kind: output, shape index: {}]
  %s8 = sld [smem:[#allocation0]]
  $region61: #{residual_block_pallas.5} parent=0
    _
  %s10 = ssub.s32 1, %s8
  %s11 = scalar_select 0, %s10, %s8
  $region1: #{residual_block_pallas.5} parent=0
    #allocation2 [shape = 'u8[8192]{0}', space=vmem, size = 0x2000, scoped, tag = 'output window, operand 0']
    #allocation3 [shape = 's32[2]{0}', space=sflag, size = 0x8, scoped, tag = 'scoped memory for residual_block_pallas.5']
    %12 = vsyncpa [#allocation3], 0
    %s13 = scalar_lea.sflag [#allocation3], 1
    %14 = vsyncpa %s13, 0
    loop: start=0, step=1, limit=4
    $region2: #{residual_block_pallas.5} parent=1 // loop_pre_header
      _
    $region3: #{residual_block_pallas.5} parent=1 // loop_header
      %s16 = sphi 0, %s20
      %p17 = scmp.ge.s32.totalorder %s16, 4
      %s26 = sphi 0, %s28
      %s29 = sphi 0, %s26
      %s30 = sphi 0, %s29
      %s46 = sphi 0, %s30
      %s50 = sphi 0, %s50
      %s52 = sphi 0, %s50
      %s53 = sphi 0, %s52
      %s67 = sphi 0, %s53
      %s71 = sphi 0, %s71
      %s73 = sphi 0, %s71
      %s74 = sphi 0, %s73
      %s88 = sphi 0, %s74
      %s92 = sphi 0, %s92
      %s94 = sphi 0, %s92
      %s95 = sphi 0, %s94
      %s109 = sphi 0, %s95
      %s113 = sphi 0, %s113
      %s115 = sphi 0, %s113
      %s116 = sphi 0, %s115
      %s130 = sphi 0, %s116
      %s134 = sphi 0, %s134
      %s136 = sphi 0, %s134
      %s137 = sphi 0, %s136
      %s151 = sphi 0, %s137
      %s155 = sphi 0, %s155
      %s157 = sphi 0, %s155
      %s158 = sphi 0, %s157
      %s172 = sphi 0, %s158
      %s178 = sphi 0, %s180
      %s181 = sphi 0, %s178
      %s182 = sphi 0, %s181
      %s198 = sphi 0, %s182
    $region4: #{residual_block_pallas.5} parent=1 // loop_header_branch
      %19 = sbr.rel (%p17) target = $region8
    $region5: #{residual_block_pallas.5} parent=1 // loop_body
      %s21 = ssub.s32 %s16, 1
      %s22 = ssub.s32 %s16, 2
      %s23 = sadd.s32 %s16, 1
      %s24 = ssub.s32 %s16, %s23
      %p25 = scmp.eq.s32.totalorder %s24, 0
      %s27 = sadd.s32 %s26, 1
      %s28 = scalar_select %p25, %s26, %s27
      %p31 = pneg %p25
      %p32 = scmp.eq.s32.totalorder %s16, 1
      %p33 = por %p31, %p32
      %p34 = scmp.ne.s32.totalorder %s26, %s29
      %p35 = scmp.eq.s32.totalorder %s16, 0
      %p36 = por %p34, %p35
      %p37 = scmp.ne.s32.totalorder %s26, %s29
      %p38 = scmp.eq.s32.totalorder %s21, 1
      %p39 = por %p37, %p38
      %p40 = scmp.ne.s32.totalorder %s29, %s30
      %p41 = scmp.eq.s32.totalorder %s21, 0
      %p42 = por %p40, %p41
      %p43 = scmp.ne.s32.totalorder %s29, %s30
      %p44 = scmp.eq.s32.totalorder %s22, 1
      %p45 = por %p43, %p44
      %p47 = scmp.ne.s32.totalorder %s30, %s46
      %p48 = scmp.eq.s32.totalorder %s22, 0
      %p49 = por %p47, %p48
      %s51 = sadd.s32 %s50, 1
      %p54 = scmp.eq.s32.totalorder %s16, 1
      %p55 = scmp.ne.s32.totalorder %s50, %s52
      %p56 = scmp.eq.s32.totalorder %s16, 0
      %p57 = por %p55, %p56
      %p58 = scmp.ne.s32.totalorder %s50, %s52
      %p59 = scmp.eq.s32.totalorder %s21, 1
      %p60 = por %p58, %p59
      %p61 = scmp.ne.s32.totalorder %s52, %s53
      %p62 = scmp.eq.s32.totalorder %s21, 0
      %p63 = por %p61, %p62
      %p64 = scmp.ne.s32.totalorder %s52, %s53
      %p65 = scmp.eq.s32.totalorder %s22, 1
      %p66 = por %p64, %p65
      %p68 = scmp.ne.s32.totalorder %s53, %s67
      %p69 = scmp.eq.s32.totalorder %s22, 0
      %p70 = por %p68, %p69
      %s72 = sadd.s32 %s71, 1
      %p75 = scmp.eq.s32.totalorder %s16, 1
      %p76 = scmp.ne.s32.totalorder %s71, %s73
      %p77 = scmp.eq.s32.totalorder %s16, 0
      %p78 = por %p76, %p77
      %p79 = scmp.ne.s32.totalorder %s71, %s73
      %p80 = scmp.eq.s32.totalorder %s21, 1
      %p81 = por %p79, %p80
      %p82 = scmp.ne.s32.totalorder %s73, %s74
      %p83 = scmp.eq.s32.totalorder %s21, 0
      %p84 = por %p82, %p83
      %p85 = scmp.ne.s32.totalorder %s73, %s74
      %p86 = scmp.eq.s32.totalorder %s22, 1
      %p87 = por %p85, %p86
      %p89 = scmp.ne.s32.totalorder %s74, %s88
      %p90 = scmp.eq.s32.totalorder %s22, 0
      %p91 = por %p89, %p90
      %s93 = sadd.s32 %s92, 1
      %p96 = scmp.eq.s32.totalorder %s16, 1
      %p97 = scmp.ne.s32.totalorder %s92, %s94
      %p98 = scmp.eq.s32.totalorder %s16, 0
      %p99 = por %p97, %p98
      %p100 = scmp.ne.s32.totalorder %s92, %s94
      %p101 = scmp.eq.s32.totalorder %s21, 1
      %p102 = por %p100, %p101
      %p103 = scmp.ne.s32.totalorder %s94, %s95
      %p104 = scmp.eq.s32.totalorder %s21, 0
      %p105 = por %p103, %p104
      %p106 = scmp.ne.s32.totalorder %s94, %s95
      %p107 = scmp.eq.s32.totalorder %s22, 1
      %p108 = por %p106, %p107
      %p110 = scmp.ne.s32.totalorder %s95, %s109
      %p111 = scmp.eq.s32.totalorder %s22, 0
      %p112 = por %p110, %p111
      %s114 = sadd.s32 %s113, 1
      %p117 = scmp.eq.s32.totalorder %s16, 1
      %p118 = scmp.ne.s32.totalorder %s113, %s115
      %p119 = scmp.eq.s32.totalorder %s16, 0
      %p120 = por %p118, %p119
      %p121 = scmp.ne.s32.totalorder %s113, %s115
      %p122 = scmp.eq.s32.totalorder %s21, 1
      %p123 = por %p121, %p122
      %p124 = scmp.ne.s32.totalorder %s115, %s116
      %p125 = scmp.eq.s32.totalorder %s21, 0
      %p126 = por %p124, %p125
      %p127 = scmp.ne.s32.totalorder %s115, %s116
      %p128 = scmp.eq.s32.totalorder %s22, 1
      %p129 = por %p127, %p128
      %p131 = scmp.ne.s32.totalorder %s116, %s130
      %p132 = scmp.eq.s32.totalorder %s22, 0
      %p133 = por %p131, %p132
      %s135 = sadd.s32 %s134, 1
      %p138 = scmp.eq.s32.totalorder %s16, 1
      %p139 = scmp.ne.s32.totalorder %s134, %s136
      %p140 = scmp.eq.s32.totalorder %s16, 0
      %p141 = por %p139, %p140
      %p142 = scmp.ne.s32.totalorder %s134, %s136
      %p143 = scmp.eq.s32.totalorder %s21, 1
      %p144 = por %p142, %p143
      %p145 = scmp.ne.s32.totalorder %s136, %s137
      %p146 = scmp.eq.s32.totalorder %s21, 0
      %p147 = por %p145, %p146
      %p148 = scmp.ne.s32.totalorder %s136, %s137
      %p149 = scmp.eq.s32.totalorder %s22, 1
      %p150 = por %p148, %p149
      %p152 = scmp.ne.s32.totalorder %s137, %s151
      %p153 = scmp.eq.s32.totalorder %s22, 0
      %p154 = por %p152, %p153
      %s156 = sadd.s32 %s155, 1
      %p159 = scmp.eq.s32.totalorder %s16, 1
      %p160 = scmp.ne.s32.totalorder %s155, %s157
      %p161 = scmp.eq.s32.totalorder %s16, 0
      %p162 = por %p160, %p161
      %p163 = scmp.ne.s32.totalorder %s155, %s157
      %p164 = scmp.eq.s32.totalorder %s21, 1
      %p165 = por %p163, %p164
      %p166 = scmp.ne.s32.totalorder %s157, %s158
      %p167 = scmp.eq.s32.totalorder %s21, 0
      %p168 = por %p166, %p167
      %p169 = scmp.ne.s32.totalorder %s157, %s158
      %p170 = scmp.eq.s32.totalorder %s22, 1
      %p171 = por %p169, %p170
      %p173 = scmp.ne.s32.totalorder %s158, %s172
      %p174 = scmp.eq.s32.totalorder %s22, 0
      %p175 = por %p173, %p174
      %s176 = ssub.s32 %s16, %s23
      %p177 = scmp.eq.s32.totalorder %s176, 0
      %s179 = sadd.s32 %s178, 1
      %s180 = scalar_select %p177, %s178, %s179
      %p183 = pneg %p177
      %p184 = scmp.eq.s32.totalorder %s16, 1
      %p185 = por %p183, %p184
      %p186 = scmp.ne.s32.totalorder %s178, %s181
      %p187 = scmp.eq.s32.totalorder %s16, 0
      %p188 = por %p186, %p187
      %p189 = scmp.ne.s32.totalorder %s178, %s181
      %p190 = scmp.eq.s32.totalorder %s21, 1
      %p191 = por %p189, %p190
      %p192 = scmp.ne.s32.totalorder %s181, %s182
      %p193 = scmp.eq.s32.totalorder %s21, 0
      %p194 = por %p192, %p193
      %p195 = scmp.ne.s32.totalorder %s181, %s182
      %p196 = scmp.eq.s32.totalorder %s22, 1
      %p197 = por %p195, %p196
      %p199 = scmp.ne.s32.totalorder %s182, %s198
      %p200 = scmp.eq.s32.totalorder %s22, 0
      %p201 = por %p199, %p200
      %p202 = scmp.le.s32.totalorder 1, %s16
      %p203 = scmp.lt.s32.totalorder %s16, 3
      %p204 = pnand %p202, %p203
      %p205 = pneg %p204
      // Predicated region
      $region9: #{residual_block_pallas.5} parent=5 // pred_check
        _
      $region10: #{residual_block_pallas.5} parent=5 // pred_check_branch
        %207 = sbr.rel (%p204) target = $region12
      $region11: #{residual_block_pallas.5} parent=5 // pred_region
        %s208 = ssub.s32 %s16, 1
        // Predicated region
        $region13: #{residual_block_pallas.5} parent=11 // pred_check
          %p209 = pneg %p63
        $region14: #{residual_block_pallas.5} parent=11 // pred_check_branch
          %211 = sbr.rel (%p209) target = $region16
        $region15: #{residual_block_pallas.5} parent=11 // pred_region
          _
        $region16: #{residual_block_pallas.5} parent=11 // pred_fallthru
          _
        // Predicated region
        $region17: #{residual_block_pallas.5} parent=11 // pred_check
          %p212 = pneg %p84
        $region18: #{residual_block_pallas.5} parent=11 // pred_check_branch
          %214 = sbr.rel (%p212) target = $region20
        $region19: #{residual_block_pallas.5} parent=11 // pred_region
          _
        $region20: #{residual_block_pallas.5} parent=11 // pred_fallthru
          _
        // Predicated region
        $region21: #{residual_block_pallas.5} parent=11 // pred_check
          %p215 = pneg %p105
        $region22: #{residual_block_pallas.5} parent=11 // pred_check_branch
          %217 = sbr.rel (%p215) target = $region24
        $region23: #{residual_block_pallas.5} parent=11 // pred_region
          _
        $region24: #{residual_block_pallas.5} parent=11 // pred_fallthru
          _
        // Predicated region
        $region25: #{residual_block_pallas.5} parent=11 // pred_check
          %p218 = pneg %p126
        $region26: #{residual_block_pallas.5} parent=11 // pred_check_branch
          %220 = sbr.rel (%p218) target = $region28
        $region27: #{residual_block_pallas.5} parent=11 // pred_region
          _
        $region28: #{residual_block_pallas.5} parent=11 // pred_fallthru
          _
        // Predicated region
        $region29: #{residual_block_pallas.5} parent=11 // pred_check
          %p221 = pneg %p147
        $region30: #{residual_block_pallas.5} parent=11 // pred_check_branch
          %223 = sbr.rel (%p221) target = $region32
        $region31: #{residual_block_pallas.5} parent=11 // pred_region
          _
        $region32: #{residual_block_pallas.5} parent=11 // pred_fallthru
          _
        // Predicated region
        $region33: #{residual_block_pallas.5} parent=11 // pred_check
          %p224 = pneg %p168
        $region34: #{residual_block_pallas.5} parent=11 // pred_check_branch
          %226 = sbr.rel (%p224) target = $region36
        $region35: #{residual_block_pallas.5} parent=11 // pred_region
          _
        $region36: #{residual_block_pallas.5} parent=11 // pred_fallthru
          _
      $region12: #{residual_block_pallas.5} parent=5 // pred_fallthru
        _
      %p227 = scmp.lt.s32.totalorder %s16, 2
      // Predicated region
      $region37: #{residual_block_pallas.5} parent=5 // pred_check
        %p228 = pneg %p227
      $region38: #{residual_block_pallas.5} parent=5 // pred_check_branch
        %230 = sbr.rel (%p228) target = $region40
      $region39: #{residual_block_pallas.5} parent=5 // pred_region
        // Predicated region
        $region41: #{residual_block_pallas.5} parent=39 // pred_check
          %p231 = pneg %p36
        $region42: #{residual_block_pallas.5} parent=39 // pred_check_branch
          %233 = sbr.rel (%p231) target = $region44
        $region43: #{residual_block_pallas.5} parent=39 // pred_region
          %p234 = scmp.lt.s32.totalorder %s16, 1
          %s235 = scalar_select %p234, %s16, 1
          %s236 = smul.addr %s235, 2
          %s237 = scalar_lea.vmem %s0, %s236
        $region44: #{residual_block_pallas.5} parent=39 // pred_fallthru
          _
      $region40: #{residual_block_pallas.5} parent=5 // pred_fallthru
        _
      %p238 = scmp.le.s32.totalorder 1, %s16
      %p239 = scmp.lt.s32.totalorder %s16, 3
      %p240 = pnand %p238, %p239
      %p241 = pneg %p240
      // Predicated region
      $region45: #{residual_block_pallas.5} parent=5 // pred_check
        _
      $region46: #{residual_block_pallas.5} parent=5 // pred_check_branch
        %243 = sbr.rel (%p240) target = $region48
      $region47: #{residual_block_pallas.5} parent=5 // pred_region
        %s244 = ssub.s32 %s16, 1
        %p245 = scmp.lt.s32.totalorder %s21, 1
        %s246 = scalar_select %p245, %s21, 1
        %s247 = smul.addr %s246, 2
        %s248 = scalar_lea.vmem %s0, %s247
        %p249 = pneg %p42
        %p250 = pneg %p39
        %p251 = pneg %p63
        %p252 = pneg %p60
        %p253 = pneg %p84
        %p254 = pneg %p81
        %p255 = pneg %p105
        %p256 = pneg %p102
        %p257 = pneg %p126
        %p258 = pneg %p123
        %p259 = pneg %p147
        %p260 = pneg %p144
        %p261 = pneg %p168
        %p262 = pneg %p165
        %p263 = pneg %p194
        %p264 = pneg %p191
        %s265 = sand.u32 %s181, 1
        %s266 = scalar_lea.sflag [#allocation3], %s265
        %s267 = sand.u32 %s181, 1
        %s268 = smul.addr %s267, 8
        %s269 = scalar_lea.vmem [#allocation2], %s268
        %p270 = scmp.lt.s32.totalorder %s21, 1
        %s271 = scalar_select %p270, %s21, 1
        %s272 = smul.addr %s271, 2
        %s273 = scalar_lea.vmem %s0, %s272
        %v275 = vld [vmem:[%s273] sm:$0x3]
        %v276 = vld [vmem:[%s1] sm:$0xf]
        %vm277 = vcmask 31744
        %v279 = vsel %vm277, %v276, 0
        %vm281 = vcmask 1041408
        %v283 = vsel %vm281, %v275, 0
        %285 = vmatprep.subr.bf16.mxu0 0
        %286 = vmatpush1.bf16.msra.mxu0 0
        %287 = vmatprep.subr.bf16.mxu0 0
        %288 = vmatpush1.bf16.msra.mxu0 0
        %289 = vmatprep.subr.bf16.mxu0 0
        %290 = vmatpush1.bf16.msra.mxu0 0
        %291 = vmatprep.subr.bf16.mxu0 0
        %292 = vmatpush1.bf16.msra.mxu0 0
        %293 = vmatprep.subr.bf16.mxu0 0
        %294 = vmatpush1.bf16.msra.mxu0 0
        %295 = vmatprep.subr.bf16.mxu0 0
        %296 = vmatpush1.bf16.msra.mxu0 0
        %297 = vmatprep.subr.bf16.mxu0 0
        %298 = vmatpush1.bf16.msra.mxu0 0
        %299 = vmatprep.subr.bf16.mxu0 0
        %300 = vmatpush1.bf16.msra.mxu0 %v283
        %301 = vmatprep.subr.bf16.mxu0 0
        %302 = vmatpush2.bf16.msra.mxu0 0
        %303 = vmatprep.subr.bf16.mxu0 0
        %304 = vmatpush2.bf16.msra.mxu0 0
        %305 = vmatprep.subr.bf16.mxu0 0
        %306 = vmatpush2.bf16.msra.mxu0 0
        %307 = vmatprep.subr.bf16.mxu0 0
        %308 = vmatpush2.bf16.msra.mxu0 0
        %309 = vmatprep.subr.bf16.mxu0 0
        %310 = vmatpush2.bf16.msra.mxu0 0
        %311 = vmatprep.subr.bf16.mxu0 0
        %312 = vmatpush2.bf16.msra.mxu0 0
        %313 = vmatprep.subr.bf16.mxu0 0
        %314 = vmatpush2.bf16.msra.mxu0 0
        %315 = vmatprep.subr.bf16.mxu0 0
        %316 = vmatpush2.bf16.msra.mxu0 0
        %317 = vmatprep.mubr.bf16.mxu0 0
        %318 = vmatmul.mubr.bf16.gmra.mxu0 %v279
        %v319 = vpop.f32.mrf.mxu0
        %v320 = vadd.f32 0.0, %v319
        %v321 = vpop.f32.mrf.mxu0
        %v322 = vpop.f32.mrf.mxu0
        %v323 = vpop.f32.mrf.mxu0
        %324 = vdwg.mxu0
        %s325 = scalar_lea.vmem %s1, 4
        %v326 = vld [vmem:[%s325] sm:$0xf]
        %v328 = vsel %vm277, %v326, 0
        %330 = vmatprep.subr.bf16.mxu0 0
        %331 = vmatpush1.bf16.msra.mxu0 0
        %332 = vmatprep.subr.bf16.mxu0 0
        %333 = vmatpush1.bf16.msra.mxu0 0
        %334 = vmatprep.subr.bf16.mxu0 0
        %335 = vmatpush1.bf16.msra.mxu0 0
        %336 = vmatprep.subr.bf16.mxu0 0
        %337 = vmatpush1.bf16.msra.mxu0 0
        %338 = vmatprep.subr.bf16.mxu0 0
        %339 = vmatpush1.bf16.msra.mxu0 0
        %340 = vmatprep.subr.bf16.mxu0 0
        %341 = vmatpush1.bf16.msra.mxu0 0
        %342 = vmatprep.subr.bf16.mxu0 0
        %343 = vmatpush1.bf16.msra.mxu0 0
        %344 = vmatprep.subr.bf16.mxu0 0
        %345 = vmatpush1.bf16.msra.mxu0 %v283
        %346 = vmatprep.subr.bf16.mxu0 0
        %347 = vmatpush2.bf16.msra.mxu0 0
        %348 = vmatprep.subr.bf16.mxu0 0
        %349 = vmatpush2.bf16.msra.mxu0 0
        %350 = vmatprep.subr.bf16.mxu0 0
        %351 = vmatpush2.bf16.msra.mxu0 0
        %352 = vmatprep.subr.bf16.mxu0 0
        %353 = vmatpush2.bf16.msra.mxu0 0
        %354 = vmatprep.subr.bf16.mxu0 0
        %355 = vmatpush2.bf16.msra.mxu0 0
        %356 = vmatprep.subr.bf16.mxu0 0
        %357 = vmatpush2.bf16.msra.mxu0 0
        %358 = vmatprep.subr.bf16.mxu0 0
        %359 = vmatpush2.bf16.msra.mxu0 0
        %360 = vmatprep.subr.bf16.mxu0 0
        %361 = vmatpush2.bf16.msra.mxu0 0
        %362 = vmatprep.mubr.bf16.mxu0 0
        %363 = vmatmul.mubr.bf16.gmra.mxu0 %v328
        %v364 = vpop.f32.mrf.mxu0
        %v365 = vadd.f32 0.0, %v364
        %v366 = vpop.f32.mrf.mxu0
        %v367 = vpop.f32.mrf.mxu0
        %v368 = vpop.f32.mrf.mxu0
        %369 = vdwg.mxu0
        %s370 = scalar_lea.vmem %s1, 8
        %v371 = vld [vmem:[%s370] sm:$0xf]
        %v373 = vsel %vm277, %v371, 0
        %375 = vmatprep.subr.bf16.mxu0 0
        %376 = vmatpush1.bf16.msra.mxu0 0
        %377 = vmatprep.subr.bf16.mxu0 0
        %378 = vmatpush1.bf16.msra.mxu0 0
        %379 = vmatprep.subr.bf16.mxu0 0
        %380 = vmatpush1.bf16.msra.mxu0 0
        %381 = vmatprep.subr.bf16.mxu0 0
        %382 = vmatpush1.bf16.msra.mxu0 0
        %383 = vmatprep.subr.bf16.mxu0 0
        %384 = vmatpush1.bf16.msra.mxu0 0
        %385 = vmatprep.subr.bf16.mxu0 0
        %386 = vmatpush1.bf16.msra.mxu0 0
        %387 = vmatprep.subr.bf16.mxu0 0
        %388 = vmatpush1.bf16.msra.mxu0 0
        %389 = vmatprep.subr.bf16.mxu0 0
        %390 = vmatpush1.bf16.msra.mxu0 %v283
        %391 = vmatprep.subr.bf16.mxu0 0
        %392 = vmatpush2.bf16.msra.mxu0 0
        %393 = vmatprep.subr.bf16.mxu0 0
        %394 = vmatpush2.bf16.msra.mxu0 0
        %395 = vmatprep.subr.bf16.mxu0 0
        %396 = vmatpush2.bf16.msra.mxu0 0
        %397 = vmatprep.subr.bf16.mxu0 0
        %398 = vmatpush2.bf16.msra.mxu0 0
        %399 = vmatprep.subr.bf16.mxu0 0
        %400 = vmatpush2.bf16.msra.mxu0 0
        %401 = vmatprep.subr.bf16.mxu0 0
        %402 = vmatpush2.bf16.msra.mxu0 0
        %403 = vmatprep.subr.bf16.mxu0 0
        %404 = vmatpush2.bf16.msra.mxu0 0
        %405 = vmatprep.subr.bf16.mxu0 0
        %406 = vmatpush2.bf16.msra.mxu0 0
        %407 = vmatprep.mubr.bf16.mxu0 0
        %408 = vmatmul.mubr.bf16.gmra.mxu0 %v373
        %v409 = vpop.f32.mrf.mxu0
        %v410 = vadd.f32 0.0, %v409
        %v411 = vpop.f32.mrf.mxu0
        %v412 = vpop.f32.mrf.mxu0
        %v413 = vpop.f32.mrf.mxu0
        %414 = vdwg.mxu0
        %416 = vrot.lane.b32.xlu0 %v320, 1
        %v417 = vpop.permute.xlu0 %416
        %vm419 = vcmask 7168
        %v420 = vsel %vm419, 0.0, %v417
        %v421 = vadd.f32 %v420, %v365
        %423 = vrot.lane.b32.xlu0 %v410, 127
        %v424 = vpop.permute.xlu0 %423
        %vm426 = vcmask 121856
        %v427 = vsel %vm426, %v424, 0.0
        %v428 = vadd.f32 %v421, %v427
        %v429 = vld [vmem:[%s4] sm:$0xff]
        %431 = vset.pattern.permute.xlu0 0
        %432 = vperm.xlu0 %431, %v429
        %v433 = vpop.permute.xlu0 %432
        %v435 = vmul.f32 %v428, %v433
        %436 = vset.pattern.permute.xlu0 1
        %437 = vperm.xlu0 %436, %v429
        %v438 = vpop.permute.xlu0 %437
        %v440 = vadd.f32 %v435, %v438
        %v441 = vmax.f32 %v440, 0.0
        %v442 = vpack.c.bf16 %v441, %v441
        %v443 = vld [vmem:[%s2] sm:$0xf]
        %vm444 = vcmask 64512
        %v446 = vsel %vm444, %v443, 0
        %vm448 = vcmask 1043456
        %v450 = vsel %vm448, %v442, 0
        %452 = vmatprep.subr.bf16.mxu0 0
        %453 = vmatpush1.bf16.msra.mxu0 0
        %454 = vmatprep.subr.bf16.mxu0 0
        %455 = vmatpush1.bf16.msra.mxu0 0
        %456 = vmatprep.subr.bf16.mxu0 0
        %457 = vmatpush1.bf16.msra.mxu0 0
        %458 = vmatprep.subr.bf16.mxu0 0
        %459 = vmatpush1.bf16.msra.mxu0 0
        %460 = vmatprep.subr.bf16.mxu0 0
        %461 = vmatpush1.bf16.msra.mxu0 0
        %462 = vmatprep.subr.bf16.mxu0 0
        %463 = vmatpush1.bf16.msra.mxu0 0
        %464 = vmatprep.subr.bf16.mxu0 0
        %465 = vmatpush1.bf16.msra.mxu0 0
        %466 = vmatprep.subr.bf16.mxu0 0
        %467 = vmatpush1.bf16.msra.mxu0 %v450
        %468 = vmatprep.subr.bf16.mxu0 0
        %469 = vmatpush2.bf16.msra.mxu0 0
        %470 = vmatprep.subr.bf16.mxu0 0
        %471 = vmatpush2.bf16.msra.mxu0 0
        %472 = vmatprep.subr.bf16.mxu0 0
        %473 = vmatpush2.bf16.msra.mxu0 0
        %474 = vmatprep.subr.bf16.mxu0 0
        %475 = vmatpush2.bf16.msra.mxu0 0
        %476 = vmatprep.subr.bf16.mxu0 0
        %477 = vmatpush2.bf16.msra.mxu0 0
        %478 = vmatprep.subr.bf16.mxu0 0
        %479 = vmatpush2.bf16.msra.mxu0 0
        %480 = vmatprep.subr.bf16.mxu0 0
        %481 = vmatpush2.bf16.msra.mxu0 0
        %482 = vmatprep.subr.bf16.mxu0 0
        %483 = vmatpush2.bf16.msra.mxu0 0
        %484 = vmatprep.mubr.bf16.mxu0 0
        %485 = vmatmul.mubr.bf16.gmra.mxu0 %v446
        %v486 = vpop.f32.mrf.mxu0
        %v487 = vadd.f32 0.0, %v486
        %v488 = vpop.f32.mrf.mxu0
        %v489 = vpop.f32.mrf.mxu0
        %v490 = vpop.f32.mrf.mxu0
        %491 = vdwg.mxu0
        %s492 = scalar_lea.vmem %s2, 4
        %v493 = vld [vmem:[%s492] sm:$0xf]
        %v495 = vsel %vm444, %v493, 0
        %497 = vmatprep.subr.bf16.mxu0 0
        %498 = vmatpush1.bf16.msra.mxu0 0
        %499 = vmatprep.subr.bf16.mxu0 0
        %500 = vmatpush1.bf16.msra.mxu0 0
        %501 = vmatprep.subr.bf16.mxu0 0
        %502 = vmatpush1.bf16.msra.mxu0 0
        %503 = vmatprep.subr.bf16.mxu0 0
        %504 = vmatpush1.bf16.msra.mxu0 0
        %505 = vmatprep.subr.bf16.mxu0 0
        %506 = vmatpush1.bf16.msra.mxu0 0
        %507 = vmatprep.subr.bf16.mxu0 0
        %508 = vmatpush1.bf16.msra.mxu0 0
        %509 = vmatprep.subr.bf16.mxu0 0
        %510 = vmatpush1.bf16.msra.mxu0 0
        %511 = vmatprep.subr.bf16.mxu0 0
        %512 = vmatpush1.bf16.msra.mxu0 %v450
        %513 = vmatprep.subr.bf16.mxu0 0
        %514 = vmatpush2.bf16.msra.mxu0 0
        %515 = vmatprep.subr.bf16.mxu0 0
        %516 = vmatpush2.bf16.msra.mxu0 0
        %517 = vmatprep.subr.bf16.mxu0 0
        %518 = vmatpush2.bf16.msra.mxu0 0
        %519 = vmatprep.subr.bf16.mxu0 0
        %520 = vmatpush2.bf16.msra.mxu0 0
        %521 = vmatprep.subr.bf16.mxu0 0
        %522 = vmatpush2.bf16.msra.mxu0 0
        %523 = vmatprep.subr.bf16.mxu0 0
        %524 = vmatpush2.bf16.msra.mxu0 0
        %525 = vmatprep.subr.bf16.mxu0 0
        %526 = vmatpush2.bf16.msra.mxu0 0
        %527 = vmatprep.subr.bf16.mxu0 0
        %528 = vmatpush2.bf16.msra.mxu0 0
        %529 = vmatprep.mubr.bf16.mxu0 0
        %530 = vmatmul.mubr.bf16.gmra.mxu0 %v495
        %v531 = vpop.f32.mrf.mxu0
        %v532 = vadd.f32 0.0, %v531
        %v533 = vpop.f32.mrf.mxu0
        %v534 = vpop.f32.mrf.mxu0
        %v535 = vpop.f32.mrf.mxu0
        %536 = vdwg.mxu0
        %s537 = scalar_lea.vmem %s2, 8
        %v538 = vld [vmem:[%s537] sm:$0xf]
        %v540 = vsel %vm444, %v538, 0
        %542 = vmatprep.subr.bf16.mxu0 0
        %543 = vmatpush1.bf16.msra.mxu0 0
        %544 = vmatprep.subr.bf16.mxu0 0
        %545 = vmatpush1.bf16.msra.mxu0 0
        %546 = vmatprep.subr.bf16.mxu0 0
        %547 = vmatpush1.bf16.msra.mxu0 0
        %548 = vmatprep.subr.bf16.mxu0 0
        %549 = vmatpush1.bf16.msra.mxu0 0
        %550 = vmatprep.subr.bf16.mxu0 0
        %551 = vmatpush1.bf16.msra.mxu0 0
        %552 = vmatprep.subr.bf16.mxu0 0
        %553 = vmatpush1.bf16.msra.mxu0 0
        %554 = vmatprep.subr.bf16.mxu0 0
        %555 = vmatpush1.bf16.msra.mxu0 0
        %556 = vmatprep.subr.bf16.mxu0 0
        %557 = vmatpush1.bf16.msra.mxu0 %v450
        %558 = vmatprep.subr.bf16.mxu0 0
        %559 = vmatpush2.bf16.msra.mxu0 0
        %560 = vmatprep.subr.bf16.mxu0 0
        %561 = vmatpush2.bf16.msra.mxu0 0
        %562 = vmatprep.subr.bf16.mxu0 0
        %563 = vmatpush2.bf16.msra.mxu0 0
        %564 = vmatprep.subr.bf16.mxu0 0
        %565 = vmatpush2.bf16.msra.mxu0 0
        %566 = vmatprep.subr.bf16.mxu0 0
        %567 = vmatpush2.bf16.msra.mxu0 0
        %568 = vmatprep.subr.bf16.mxu0 0
        %569 = vmatpush2.bf16.msra.mxu0 0
        %570 = vmatprep.subr.bf16.mxu0 0
        %571 = vmatpush2.bf16.msra.mxu0 0
        %572 = vmatprep.subr.bf16.mxu0 0
        %573 = vmatpush2.bf16.msra.mxu0 0
        %574 = vmatprep.mubr.bf16.mxu0 0
        %575 = vmatmul.mubr.bf16.gmra.mxu0 %v540
        %v576 = vpop.f32.mrf.mxu0
        %v577 = vadd.f32 0.0, %v576
        %v578 = vpop.f32.mrf.mxu0
        %v579 = vpop.f32.mrf.mxu0
        %v580 = vpop.f32.mrf.mxu0
        %581 = vdwg.mxu0
        %583 = vrot.lane.b32.xlu0 %v487, 1
        %v584 = vpop.permute.xlu0 %583
        %v586 = vsel %vm419, 0.0, %v584
        %v587 = vadd.f32 %v586, %v532
        %589 = vrot.lane.b32.xlu0 %v577, 127
        %v590 = vpop.permute.xlu0 %589
        %v592 = vsel %vm426, %v590, 0.0
        %v593 = vadd.f32 %v587, %v592
        %v594 = vld [vmem:[%s5] sm:$0xff]
        %596 = vset.pattern.permute.xlu0 0
        %597 = vperm.xlu0 %596, %v594
        %v598 = vpop.permute.xlu0 %597
        %v600 = vmul.f32 %v593, %v598
        %601 = vset.pattern.permute.xlu0 1
        %602 = vperm.xlu0 %601, %v594
        %v603 = vpop.permute.xlu0 %602
        %v605 = vadd.f32 %v600, %v603
        %v606 = vld [vmem:[%s3] sm:$0xf]
        %v608 = vsel %vm277, %v606, 0
        %610 = vmatprep.subr.bf16.mxu0 0
        %611 = vmatpush1.bf16.msra.mxu0 0
        %612 = vmatprep.subr.bf16.mxu0 0
        %613 = vmatpush1.bf16.msra.mxu0 0
        %614 = vmatprep.subr.bf16.mxu0 0
        %615 = vmatpush1.bf16.msra.mxu0 0
        %616 = vmatprep.subr.bf16.mxu0 0
        %617 = vmatpush1.bf16.msra.mxu0 0
        %618 = vmatprep.subr.bf16.mxu0 0
        %619 = vmatpush1.bf16.msra.mxu0 0
        %620 = vmatprep.subr.bf16.mxu0 0
        %621 = vmatpush1.bf16.msra.mxu0 0
        %622 = vmatprep.subr.bf16.mxu0 0
        %623 = vmatpush1.bf16.msra.mxu0 0
        %624 = vmatprep.subr.bf16.mxu0 0
        %625 = vmatpush1.bf16.msra.mxu0 %v283
        %626 = vmatprep.subr.bf16.mxu0 0
        %627 = vmatpush2.bf16.msra.mxu0 0
        %628 = vmatprep.subr.bf16.mxu0 0
        %629 = vmatpush2.bf16.msra.mxu0 0
        %630 = vmatprep.subr.bf16.mxu0 0
        %631 = vmatpush2.bf16.msra.mxu0 0
        %632 = vmatprep.subr.bf16.mxu0 0
        %633 = vmatpush2.bf16.msra.mxu0 0
        %634 = vmatprep.subr.bf16.mxu0 0
        %635 = vmatpush2.bf16.msra.mxu0 0
        %636 = vmatprep.subr.bf16.mxu0 0
        %637 = vmatpush2.bf16.msra.mxu0 0
        %638 = vmatprep.subr.bf16.mxu0 0
        %639 = vmatpush2.bf16.msra.mxu0 0
        %640 = vmatprep.subr.bf16.mxu0 0
        %641 = vmatpush2.bf16.msra.mxu0 0
        %642 = vmatprep.mubr.bf16.mxu0 0
        %643 = vmatmul.mubr.bf16.gmra.mxu0 %v608
        %v644 = vpop.f32.mrf.mxu0
        %v645 = vadd.f32 0.0, %v644
        %v646 = vpop.f32.mrf.mxu0
        %v647 = vpop.f32.mrf.mxu0
        %v648 = vpop.f32.mrf.mxu0
        %649 = vdwg.mxu0
        %v650 = vld [vmem:[%s6] sm:$0xff]
        %652 = vset.pattern.permute.xlu0 0
        %653 = vperm.xlu0 %652, %v650
        %v654 = vpop.permute.xlu0 %653
        %v656 = vmul.f32 %v645, %v654
        %657 = vset.pattern.permute.xlu0 1
        %658 = vperm.xlu0 %657, %v650
        %v659 = vpop.permute.xlu0 %658
        %v661 = vadd.f32 %v656, %v659
        %v662 = vadd.f32 %v605, %v661
        %v663 = vmax.f32 %v662, 0.0
        %vm664 = vcmask 130048
        %665 = vst.msk [vmem:[%s269] sm:$0xff] %vm664, %v663
        %s666 = sand.u32 %s181, 1
        %s667 = scalar_lea.sflag [#allocation3], %s666
        %s668 = sand.u32 %s181, 1
        %s669 = smul.addr %s668, 8
        %s670 = scalar_lea.vmem [#allocation2], %s669
        // Predicated region
        $region49: #{residual_block_pallas.5} parent=47 // pred_check
          %p671 = pneg %p191
        $region50: #{residual_block_pallas.5} parent=47 // pred_check_branch
          %673 = sbr.rel (%p671) target = $region52
        $region51: #{residual_block_pallas.5} parent=47 // pred_region
          %s675 = ssub.s32 128, 128
          %676 = vsyncadd %s667, %s675
          %s677 = smul.addr %s21, 128
          %s678 = scalar_lea.hbm %s7, %s677
          %s680 = sshll.u32 %s670, 4
          %s681 = int_to_ptr.vmem [resolvable:$true] %s680
          %683 = dma.vmem_to_hbm [thread:$0]  %s681, 128, %s678, %s667
        $region52: #{residual_block_pallas.5} parent=47 // pred_fallthru
          _
      $region48: #{residual_block_pallas.5} parent=5 // pred_fallthru
        _
      %p684 = scmp.le.s32.totalorder 2, %s16
      // Predicated region
      $region53: #{residual_block_pallas.5} parent=5 // pred_check
        %p685 = pneg %p684
      $region54: #{residual_block_pallas.5} parent=5 // pred_check_branch
        %687 = sbr.rel (%p685) target = $region56
      $region55: #{residual_block_pallas.5} parent=5 // pred_region
        %s688 = ssub.s32 %s16, 2
        // Predicated region
        $region57: #{residual_block_pallas.5} parent=55 // pred_check
          %p689 = pneg %p197
        $region58: #{residual_block_pallas.5} parent=55 // pred_check_branch
          %691 = sbr.rel (%p689) target = $region60
        $region59: #{residual_block_pallas.5} parent=55 // pred_region
          %s692 = sand.u32 %s182, 1
          %s693 = scalar_lea.sflag [#allocation3], %s692
          %s694 = sand.u32 %s182, 1
          %s695 = smul.addr %s694, 8
          %s696 = scalar_lea.vmem [#allocation2], %s695
          %697 = dma.done %s693, 128
        $region60: #{residual_block_pallas.5} parent=55 // pred_fallthru
          _
      $region56: #{residual_block_pallas.5} parent=5 // pred_fallthru
        _
    $region6: #{residual_block_pallas.5} parent=1 // loop_footer
      %s20 = sadd.s32 1, %s16
    $region7: #{residual_block_pallas.5} parent=1 // loop_footer_branch
      %15 = sbr.rel target = $region3
    $region8: #{residual_block_pallas.5} parent=1 // loop_exit
      _
    %698 = vsyncpa [#allocation3], 1
    %s699 = scalar_lea.sflag [#allocation3], 1
    %700 = vsyncpa %s699, 1

</llo_original>
